<compile_context>
chip_gen: v6e
topology: v6e:2x2x1
jax: 0.10.0
libtpu: 0.0.40
codegen_flags: <defaults>
</compile_context>

<pallas_src>
import functools

import jax
import jax.numpy as jnp
from jax.experimental import pallas as pl
from jax.experimental.pallas import tpu as pltpu


def _round_up(x, m):
    return (x + m - 1) // m * m


def _largest_tile(n_pad, cap):
    """Largest multiple of 128 that divides n_pad and is <= cap."""
    best = 128
    for cand in range(128, min(cap, n_pad) + 1, 128):
        if n_pad % cand == 0:
            best = cand
    return best


# --------------------------------------------------------------------------- #
# Per-layer projection:  Hl = X @ Wl   (bf16, aggregated by A later)
#                        Hr = X @ Wr + b  (f32 self/root term, bias folded in)
# --------------------------------------------------------------------------- #
def _project_kernel(x_ref, wl_ref, wr_ref, b_ref, hl_ref, hr_ref):
    x = x_ref[...]
    hl = jnp.dot(x, wl_ref[...], preferred_element_type=jnp.float32)
    hl_ref[...] = hl.astype(hl_ref.dtype)
    hr = jnp.dot(x, wr_ref[...], preferred_element_type=jnp.float32) + b_ref[...]
    hr_ref[...] = hr.astype(hr_ref.dtype)


def _project_pallas(x_pad, wl_p, wr_p, b_p, *, tm):
    n_pad, cin_pad = x_pad.shape
    cout_pad = wl_p.shape[1]
    return pl.pallas_call(
        _project_kernel,
        out_shape=(jax.ShapeDtypeStruct((n_pad, cout_pad), jnp.bfloat16),
                   jax.ShapeDtypeStruct((n_pad, cout_pad), jnp.float32)),
        grid_spec=pltpu.PrefetchScalarGridSpec(
            num_scalar_prefetch=0,
            grid=(n_pad // tm,),
            in_specs=[
                pl.BlockSpec((tm, cin_pad), lambda i: (i, 0)),           # X rows
                pl.BlockSpec((cin_pad, cout_pad), lambda i: (0, 0)),     # Wl resident
                pl.BlockSpec((cin_pad, cout_pad), lambda i: (0, 0)),     # Wr resident
                pl.BlockSpec((1, cout_pad), lambda i: (0, 0)),           # bias resident
            ],
            out_specs=[
                pl.BlockSpec((tm, cout_pad), lambda i: (i, 0)),
                pl.BlockSpec((tm, cout_pad), lambda i: (i, 0)),
            ],
        ),
        compiler_params=pltpu.CompilerParams(dimension_semantics=("parallel",)),
    )(x_pad, wl_p, wr_p, b_p)


# --------------------------------------------------------------------------- #
# Main hot loop:  out = relu?( A_mean @ Hl + Hr )  streamed over (row, K) tiles.
# --------------------------------------------------------------------------- #
def _aggregate_kernel(a_ref, hl_ref, hr_ref, o_ref, acc_ref, *, apply_relu):
    # a_ref:  (TM, TK)        bf16 tile of row-normalized adjacency at (i, k)
    # hl_ref: (TK, Cout_pad)  bf16 projected neighbor features at block k
    # hr_ref: (TM, Cout_pad)  f32 self term (+bias) at block i (constant over k)
    # o_ref:  (TM, Cout_pad)  bf16 output block (same block across k)
    # acc_ref:(TM, Cout_pad)  f32 scratch accumulator (stays f32 end-to-end)
    k = pl.program_id(1)

    @pl.when(k == 0)
    def _():
        acc_ref[...] = jnp.zeros_like(acc_ref)

    acc_ref[...] += jnp.dot(a_ref[...], hl_ref[...],
                            preferred_element_type=jnp.float32)

    @pl.when(k == pl.num_programs(1) - 1)
    def _():
        out = acc_ref[...] + hr_ref[...]
        if apply_relu:
            out = jnp.maximum(out, 0.0)
        o_ref[...] = out.astype(o_ref.dtype)


def _aggregate_pallas(a_pad, hl, hr, *, apply_relu, tm, tk):
    n_pad = a_pad.shape[0]
    cout_pad = hl.shape[1]
    return pl.pallas_call(
        functools.partial(_aggregate_kernel, apply_relu=apply_relu),
        out_shape=jax.ShapeDtypeStruct((n_pad, cout_pad), jnp.bfloat16),
        grid_spec=pltpu.PrefetchScalarGridSpec(
            num_scalar_prefetch=0,
            grid=(n_pad // tm, n_pad // tk),
            in_specs=[
                pl.BlockSpec((tm, tk), lambda i, k: (i, k)),             # A stream
                pl.BlockSpec((tk, cout_pad), lambda i, k: (k, 0)),       # Hl (neighbors)
                pl.BlockSpec((tm, cout_pad), lambda i, k: (i, 0)),       # Hr (self+bias)
            ],
            out_specs=pl.BlockSpec((tm, cout_pad), lambda i, k: (i, 0)),
            scratch_shapes=[pltpu.VMEM((tm, cout_pad), jnp.float32)],
        ),
        compiler_params=pltpu.CompilerParams(
            dimension_semantics=("parallel", "arbitrary")),
    )(a_pad, hl, hr)


# --------------------------------------------------------------------------- #
# Graph / model plumbing.
# --------------------------------------------------------------------------- #
def build_mean_adjacency(edge_index, num_nodes):
    # edge_index: [2, E] int32; row 0 = source, row 1 = target (PyG convention).
    # Mean aggregation at target i over messages x_j from its in-neighbors j.
    # Degree counting stays in f32 (exact for realistic degrees).
    src = edge_index[0]
    dst = edge_index[1]
    a = jnp.zeros((num_nodes, num_nodes), jnp.float32).at[dst, src].add(1.0)
    deg = jnp.sum(a, axis=1, keepdims=True)
    return a / jnp.maximum(deg, 1.0)  # zero in-degree -> zero aggregation (PyG behavior)


def init_sage_params(key, in_channels, hidden_channels, out_channels, num_layers=2):
    dims = [in_channels] + [hidden_channels] * (num_layers - 1) + [out_channels]
    params = []
    for layer in range(num_layers):
        c_in, c_out = dims[layer], dims[layer + 1]
        key, k1, k2, k3 = jax.random.split(key, 4)
        scale = 1.0 / jnp.sqrt(jnp.float32(c_in))
        w_l = jax.random.uniform(k1, (c_in, c_out), jnp.float32, -scale, scale)
        w_r = jax.random.uniform(k2, (c_in, c_out), jnp.float32, -scale, scale)
        b = jax.random.uniform(k3, (1, c_out), jnp.float32, -scale, scale)
        params.append((w_l, w_r, b))
    return params


def sage_forward(x, a_mean, params, *, tile_m=1024, tile_k=2048):
    n = x.shape[0]
    n128 = _round_up(n, 128)
    # Bounded over-padding (dense-A bytes grow with n_pad^2): pad rows to at
    # most 512-granularity (no lcm trap).
    n_pad = _round_up(n, min(512, n128))
    # Row tile: keep >=2 row blocks when possible so the "parallel" axis can
    # shard across v7x's 2 TensorCores.  K tile: as large as the cap allows.
    tm = _largest_tile(n_pad, min(tile_m, max(128, n_pad // 2)))
    tk = _largest_tile(n_pad, tile_k)

    # A is padded/cast to bf16 once per forward and reused by all layers.
    a_pad = jnp.zeros((n_pad, n_pad), jnp.bfloat16).at[:n, :n].set(
        a_mean.astype(jnp.bfloat16))

    # Pad/cast the input features once; afterwards activations stay as padded
    # bf16 (n_pad, c_pad) arrays chained directly between layers.
    c_in0 = params[0][0].shape[0]
    cin_pad0 = _round_up(c_in0, 128)
    h_pad = jnp.zeros((n_pad, cin_pad0), jnp.bfloat16).at[:n, :c_in0].set(
        x.astype(jnp.bfloat16))

    num_layers = len(params)
    for i, (w_l, w_r, b) in enumerate(params):
        c_in, c_out = w_l.shape
        cin_pad = _round_up(c_in, 128)
        cout_pad = _round_up(c_out, 128)
        assert h_pad.shape == (n_pad, cin_pad)

        wl_p = jnp.zeros((cin_pad, cout_pad), jnp.bfloat16).at[:c_in, :c_out].set(
            w_l.astype(jnp.bfloat16))
        wr_p = jnp.zeros((cin_pad, cout_pad), jnp.bfloat16).at[:c_in, :c_out].set(
            w_r.astype(jnp.bfloat16))
        b_p = jnp.zeros((1, cout_pad), jnp.float32).at[:, :c_out].set(b)

        hl, hr = _project_pallas(h_pad, wl_p, wr_p, b_p, tm=tm)
        h_pad = _aggregate_pallas(a_pad, hl, hr,
                                  apply_relu=(i < num_layers - 1), tm=tm, tk=tk)
        # F.dropout(p=0.5, training=False) -> identity in eval mode.

    c_out_last = params[-1][0].shape[1]
    return h_pad[:n, :c_out_last].astype(jnp.float32)


def sage_reference(x, a_mean, params):
    # Pure-JAX f32 reference for the eval-mode forward pass.
    h = x
    num_layers = len(params)
    for i, (w_l, w_r, b) in enumerate(params):
        agg = a_mean @ h
        out = agg @ w_l + h @ w_r + b
        if i < num_layers - 1:
            out = jnp.maximum(out, 0.0)
        h = out
    return h


if __name__ == "__main__":
    key = jax.random.PRNGKey(0)
    k_x, k_e, k_p = jax.random.split(key, 3)

    num_nodes = 32
    num_edges = 64
    in_channels, hidden_channels, out_channels = 16, 32, 8

    x = jax.random.normal(k_x, (num_nodes, in_channels), jnp.float32)
    edge_index = jax.random.randint(k_e, (2, num_edges), 0, num_nodes, jnp.int32)
    params = init_sage_params(k_p, in_channels, hidden_channels, out_channels,
                              num_layers=2)

    # Build the mean-aggregation matrix once per graph (reused across layers/calls).
    a_mean = build_mean_adjacency(edge_index, num_nodes)

    fwd = jax.jit(sage_forward)
    out = jax.block_until_ready(fwd(x, a_mean, params))
    assert out.shape == (num_nodes, out_channels)

    ref = sage_reference(x, a_mean, params)
    assert jnp.allclose(out, ref, atol=1e-1, rtol=5e-2), float(
        jnp.max(jnp.abs(out - ref)))

    print("KERNEL_OK")
</pallas_src>

<mosaic_0001>
module attributes {stable_mosaic.version = 11 : i64} {
  func.func @_project_kernel(%arg0: i32, %arg1: memref<128x128xbf16, #tpu.memory_space<vmem>>, %arg2: memref<128x128xbf16, #tpu.memory_space<vmem>>, %arg3: memref<128x128xbf16, #tpu.memory_space<vmem>>, %arg4: memref<1x128xf32, #tpu.memory_space<vmem>>, %arg5: memref<128x128xbf16, #tpu.memory_space<vmem>>, %arg6: memref<128x128xf32, #tpu.memory_space<vmem>>) attributes {dimension_semantics = [#tpu.dimension_semantics<parallel>], iteration_bounds = array<i64: 1>, scalar_prefetch = 0 : i64, scratch_operands = 0 : i64, tpu.core_type = #tpu.core_type<tc>, window_params = [{transform_indices = @transform_0, window_bounds = array<i64: 128, 128>}, {pipeline_mode = #tpu.pipeline_mode<synchronous>, transform_indices = @transform_1, window_bounds = array<i64: 128, 128>}, {pipeline_mode = #tpu.pipeline_mode<synchronous>, transform_indices = @transform_2, window_bounds = array<i64: 128, 128>}, {pipeline_mode = #tpu.pipeline_mode<synchronous>, transform_indices = @transform_3, window_bounds = array<i64: 1, 128>}, {transform_indices = @transform_4, window_bounds = array<i64: 128, 128>}, {transform_indices = @transform_5, window_bounds = array<i64: 128, 128>}]} {
    %c0 = arith.constant 0 : index
    %c0_0 = arith.constant 0 : index
    %0 = vector.load %arg1[%c0, %c0_0] : memref<128x128xbf16, #tpu.memory_space<vmem>>, vector<128x128xbf16>
    %c0_1 = arith.constant 0 : index
    %c0_2 = arith.constant 0 : index
    %1 = vector.load %arg2[%c0_1, %c0_2] : memref<128x128xbf16, #tpu.memory_space<vmem>>, vector<128x128xbf16>
    %cst = arith.constant dense<0.000000e+00> : vector<128x128xf32>
    %2 = tpu.matmul %0, %1, %cst {dimension_numbers = #tpu.dot_dimension_numbers<[1], [0], [0], [1], [0, 0, 1, 1], [], []>} : vector<128x128xbf16>, vector<128x128xbf16>, vector<128x128xf32> -> vector<128x128xf32>
    %3 = arith.truncf %2 : vector<128x128xf32> to vector<128x128xbf16>
    %c0_3 = arith.constant 0 : index
    %c0_4 = arith.constant 0 : index
    %4 = vector.load %arg5[%c0_3, %c0_4] : memref<128x128xbf16, #tpu.memory_space<vmem>>, vector<128x128xbf16>
    tpu.vector_store %arg5[%c0_3, %c0_4], %3 {strides = array<i32>} : memref<128x128xbf16, #tpu.memory_space<vmem>>, vector<128x128xbf16>,
    %c0_5 = arith.constant 0 : index
    %c0_6 = arith.constant 0 : index
    %5 = vector.load %arg3[%c0_5, %c0_6] : memref<128x128xbf16, #tpu.memory_space<vmem>>, vector<128x128xbf16>
    %cst_7 = arith.constant dense<0.000000e+00> : vector<128x128xf32>
    %6 = tpu.matmul %0, %5, %cst_7 {dimension_numbers = #tpu.dot_dimension_numbers<[1], [0], [0], [1], [0, 0, 1, 1], [], []>} : vector<128x128xbf16>, vector<128x128xbf16>, vector<128x128xf32> -> vector<128x128xf32>
    %c0_8 = arith.constant 0 : index
    %c0_9 = arith.constant 0 : index
    %7 = vector.load %arg4[%c0_8, %c0_9] : memref<1x128xf32, #tpu.memory_space<vmem>>, vector<1x128xf32>
    %8 = vector.broadcast %7 : vector<1x128xf32> to vector<128x128xf32>
    %9 = arith.addf %6, %8 : vector<128x128xf32>
    %c0_10 = arith.constant 0 : index
    %c0_11 = arith.constant 0 : index
    %10 = vector.load %arg6[%c0_10, %c0_11] : memref<128x128xf32, #tpu.memory_space<vmem>>, vector<128x128xf32>
    tpu.vector_store %arg6[%c0_10, %c0_11], %9 {strides = array<i32>} : memref<128x128xf32, #tpu.memory_space<vmem>>, vector<128x128xf32>,
    return
  }
  func.func @transform_0(%arg0: i32) -> (i32, i32) {
    %c0_i32 = arith.constant 0 : i32
    %c0_i32_0 = arith.constant 0 : i32
    return %arg0, %c0_i32 : i32, i32
  }
  func.func @transform_1(%arg0: i32) -> (i32, i32) {
    %c0_i32 = arith.constant 0 : i32
    %c0_i32_0 = arith.constant 0 : i32
    %c0_i32_1 = arith.constant 0 : i32
    return %c0_i32, %c0_i32_0 : i32, i32
  }
  func.func @transform_2(%arg0: i32) -> (i32, i32) {
    %c0_i32 = arith.constant 0 : i32
    %c0_i32_0 = arith.constant 0 : i32
    %c0_i32_1 = arith.constant 0 : i32
    return %c0_i32, %c0_i32_0 : i32, i32
  }
  func.func @transform_3(%arg0: i32) -> (i32, i32) {
    %c0_i32 = arith.constant 0 : i32
    %c0_i32_0 = arith.constant 0 : i32
    %c0_i32_1 = arith.constant 0 : i32
    return %c0_i32, %c0_i32_0 : i32, i32
  }
  func.func @transform_4(%arg0: i32) -> (i32, i32) {
    %c0_i32 = arith.constant 0 : i32
    %c0_i32_0 = arith.constant 0 : i32
    return %arg0, %c0_i32 : i32, i32
  }
  func.func @transform_5(%arg0: i32) -> (i32, i32) {
    %c0_i32 = arith.constant 0 : i32
    %c0_i32_0 = arith.constant 0 : i32
    return %arg0, %c0_i32 : i32, i32
  }
}

module attributes {stable_mosaic.version = 11 : i64} {
  func.func @_aggregate_kernel(%arg0: i32, %arg1: i32, %arg2: memref<128x128xbf16, #tpu.memory_space<vmem>>, %arg3: memref<128x128xbf16, #tpu.memory_space<vmem>>, %arg4: memref<128x128xf32, #tpu.memory_space<vmem>>, %arg5: memref<128x128xbf16, #tpu.memory_space<vmem>>, %arg6: memref<128x128xf32, #tpu.memory_space<vmem>>) attributes {dimension_semantics = [#tpu.dimension_semantics<parallel>, #tpu.dimension_semantics<arbitrary>], iteration_bounds = array<i64: 1, 1>, scalar_prefetch = 0 : i64, scratch_operands = 1 : i64, tpu.core_type = #tpu.core_type<tc>, window_params = [{transform_indices = @transform_0, window_bounds = array<i64: 128, 128>}, {transform_indices = @transform_1, window_bounds = array<i64: 128, 128>}, {transform_indices = @transform_2, window_bounds = array<i64: 128, 128>}, {transform_indices = @transform_3, window_bounds = array<i64: 128, 128>}]} {
    %c0_i32 = arith.constant 0 : i32
    %0 = arith.cmpi eq, %arg1, %c0_i32 : i32
    %1 = arith.extui %0 : i1 to i32
    %c0_i32_0 = arith.constant 0 : i32
    %2 = arith.cmpi ne, %1, %c0_i32_0 : i32
    scf.if %2 {
      %cst_10 = arith.constant 0.000000e+00 : f32
      %12 = vector.broadcast %cst_10 : f32 to vector<128x128xf32>
      %c0_11 = arith.constant 0 : index
      %c0_12 = arith.constant 0 : index
      %13 = vector.load %arg6[%c0_11, %c0_12] : memref<128x128xf32, #tpu.memory_space<vmem>>, vector<128x128xf32>
      tpu.vector_store %arg6[%c0_11, %c0_12], %12 {strides = array<i32>} : memref<128x128xf32, #tpu.memory_space<vmem>>, vector<128x128xf32>,
    } else {
    }
    %c0 = arith.constant 0 : index
    %c0_1 = arith.constant 0 : index
    %3 = vector.load %arg6[%c0, %c0_1] : memref<128x128xf32, #tpu.memory_space<vmem>>, vector<128x128xf32>
    %c0_2 = arith.constant 0 : index
    %c0_3 = arith.constant 0 : index
    %4 = vector.load %arg2[%c0_2, %c0_3] : memref<128x128xbf16, #tpu.memory_space<vmem>>, vector<128x128xbf16>
    %c0_4 = arith.constant 0 : index
    %c0_5 = arith.constant 0 : index
    %5 = vector.load %arg3[%c0_4, %c0_5] : memref<128x128xbf16, #tpu.memory_space<vmem>>, vector<128x128xbf16>
    %cst = arith.constant dense<0.000000e+00> : vector<128x128xf32>
    %6 = tpu.matmul %4, %5, %cst {dimension_numbers = #tpu.dot_dimension_numbers<[1], [0], [0], [1], [0, 0, 1, 1], [], []>} : vector<128x128xbf16>, vector<128x128xbf16>, vector<128x128xf32> -> vector<128x128xf32>
    %7 = arith.addf %3, %6 : vector<128x128xf32>
    %c0_6 = arith.constant 0 : index
    %c0_7 = arith.constant 0 : index
    %8 = vector.load %arg6[%c0_6, %c0_7] : memref<128x128xf32, #tpu.memory_space<vmem>>, vector<128x128xf32>
    tpu.vector_store %arg6[%c0_6, %c0_7], %7 {strides = array<i32>} : memref<128x128xf32, #tpu.memory_space<vmem>>, vector<128x128xf32>,
    %c0_i32_8 = arith.constant 0 : i32
    %9 = arith.cmpi eq, %arg1, %c0_i32_8 : i32
    %10 = arith.extui %9 : i1 to i32
    %c0_i32_9 = arith.constant 0 : i32
    %11 = arith.cmpi ne, %10, %c0_i32_9 : i32
    scf.if %11 {
      %c0_10 = arith.constant 0 : index
      %c0_11 = arith.constant 0 : index
      %12 = vector.load %arg6[%c0_10, %c0_11] : memref<128x128xf32, #tpu.memory_space<vmem>>, vector<128x128xf32>
      %c0_12 = arith.constant 0 : index
      %c0_13 = arith.constant 0 : index
      %13 = vector.load %arg4[%c0_12, %c0_13] : memref<128x128xf32, #tpu.memory_space<vmem>>, vector<128x128xf32>
      %14 = arith.addf %12, %13 : vector<128x128xf32>
      %cst_14 = arith.constant 0.000000e+00 : f32
      %15 = vector.broadcast %cst_14 : f32 to vector<128x128xf32>
      %16 = arith.maximumf %14, %15 : vector<128x128xf32>
      %17 = arith.truncf %16 : vector<128x128xf32> to vector<128x128xbf16>
      %c0_15 = arith.constant 0 : index
      %c0_16 = arith.constant 0 : index
      %18 = vector.load %arg5[%c0_15, %c0_16] : memref<128x128xbf16, #tpu.memory_space<vmem>>, vector<128x128xbf16>
      tpu.vector_store %arg5[%c0_15, %c0_16], %17 {strides = array<i32>} : memref<128x128xbf16, #tpu.memory_space<vmem>>, vector<128x128xbf16>,
    } else {
    }
    return
  }
  func.func @transform_0(%arg0: i32, %arg1: i32) -> (i32, i32) {
    %c0_i32 = arith.constant 0 : i32
    return %arg0, %arg1 : i32, i32
  }
  func.func @transform_1(%arg0: i32, %arg1: i32) -> (i32, i32) {
    %c0_i32 = arith.constant 0 : i32
    %c0_i32_0 = arith.constant 0 : i32
    return %arg1, %c0_i32 : i32, i32
  }
  func.func @transform_2(%arg0: i32, %arg1: i32) -> (i32, i32) {
    %c0_i32 = arith.constant 0 : i32
    %c0_i32_0 = arith.constant 0 : i32
    return %arg0, %c0_i32 : i32, i32
  }
  func.func @transform_3(%arg0: i32, %arg1: i32) -> (i32, i32) {
    %c0_i32 = arith.constant 0 : i32
    %c0_i32_0 = arith.constant 0 : i32
    return %arg0, %c0_i32 : i32, i32
  }
}

module attributes {stable_mosaic.version = 11 : i64} {
  func.func @_aggregate_kernel(%arg0: i32, %arg1: i32, %arg2: memref<128x128xbf16, #tpu.memory_space<vmem>>, %arg3: memref<128x128xbf16, #tpu.memory_space<vmem>>, %arg4: memref<128x128xf32, #tpu.memory_space<vmem>>, %arg5: memref<128x128xbf16, #tpu.memory_space<vmem>>, %arg6: memref<128x128xf32, #tpu.memory_space<vmem>>) attributes {dimension_semantics = [#tpu.dimension_semantics<parallel>, #tpu.dimension_semantics<arbitrary>], iteration_bounds = array<i64: 1, 1>, scalar_prefetch = 0 : i64, scratch_operands = 1 : i64, tpu.core_type = #tpu.core_type<tc>, window_params = [{transform_indices = @transform_0, window_bounds = array<i64: 128, 128>}, {transform_indices = @transform_1, window_bounds = array<i64: 128, 128>}, {transform_indices = @transform_2, window_bounds = array<i64: 128, 128>}, {transform_indices = @transform_3, window_bounds = array<i64: 128, 128>}]} {
    %c0_i32 = arith.constant 0 : i32
    %0 = arith.cmpi eq, %arg1, %c0_i32 : i32
    %1 = arith.extui %0 : i1 to i32
    %c0_i32_0 = arith.constant 0 : i32
    %2 = arith.cmpi ne, %1, %c0_i32_0 : i32
    scf.if %2 {
      %cst_10 = arith.constant 0.000000e+00 : f32
      %12 = vector.broadcast %cst_10 : f32 to vector<128x128xf32>
      %c0_11 = arith.constant 0 : index
      %c0_12 = arith.constant 0 : index
      %13 = vector.load %arg6[%c0_11, %c0_12] : memref<128x128xf32, #tpu.memory_space<vmem>>, vector<128x128xf32>
      tpu.vector_store %arg6[%c0_11, %c0_12], %12 {strides = array<i32>} : memref<128x128xf32, #tpu.memory_space<vmem>>, vector<128x128xf32>,
    } else {
    }
    %c0 = arith.constant 0 : index
    %c0_1 = arith.constant 0 : index
    %3 = vector.load %arg6[%c0, %c0_1] : memref<128x128xf32, #tpu.memory_space<vmem>>, vector<128x128xf32>
    %c0_2 = arith.constant 0 : index
    %c0_3 = arith.constant 0 : index
    %4 = vector.load %arg2[%c0_2, %c0_3] : memref<128x128xbf16, #tpu.memory_space<vmem>>, vector<128x128xbf16>
    %c0_4 = arith.constant 0 : index
    %c0_5 = arith.constant 0 : index
    %5 = vector.load %arg3[%c0_4, %c0_5] : memref<128x128xbf16, #tpu.memory_space<vmem>>, vector<128x128xbf16>
    %cst = arith.constant dense<0.000000e+00> : vector<128x128xf32>
    %6 = tpu.matmul %4, %5, %cst {dimension_numbers = #tpu.dot_dimension_numbers<[1], [0], [0], [1], [0, 0, 1, 1], [], []>} : vector<128x128xbf16>, vector<128x128xbf16>, vector<128x128xf32> -> vector<128x128xf32>
    %7 = arith.addf %3, %6 : vector<128x128xf32>
    %c0_6 = arith.constant 0 : index
    %c0_7 = arith.constant 0 : index
    %8 = vector.load %arg6[%c0_6, %c0_7] : memref<128x128xf32, #tpu.memory_space<vmem>>, vector<128x128xf32>
    tpu.vector_store %arg6[%c0_6, %c0_7], %7 {strides = array<i32>} : memref<128x128xf32, #tpu.memory_space<vmem>>, vector<128x128xf32>,
    %c0_i32_8 = arith.constant 0 : i32
    %9 = arith.cmpi eq, %arg1, %c0_i32_8 : i32
    %10 = arith.extui %9 : i1 to i32
    %c0_i32_9 = arith.constant 0 : i32
    %11 = arith.cmpi ne, %10, %c0_i32_9 : i32
    scf.if %11 {
      %c0_10 = arith.constant 0 : index
      %c0_11 = arith.constant 0 : index
      %12 = vector.load %arg6[%c0_10, %c0_11] : memref<128x128xf32, #tpu.memory_space<vmem>>, vector<128x128xf32>
      %c0_12 = arith.constant 0 : index
      %c0_13 = arith.constant 0 : index
      %13 = vector.load %arg4[%c0_12, %c0_13] : memref<128x128xf32, #tpu.memory_space<vmem>>, vector<128x128xf32>
      %14 = arith.addf %12, %13 : vector<128x128xf32>
      %15 = arith.truncf %14 : vector<128x128xf32> to vector<128x128xbf16>
      %c0_14 = arith.constant 0 : index
      %c0_15 = arith.constant 0 : index
      %16 = vector.load %arg5[%c0_14, %c0_15] : memref<128x128xbf16, #tpu.memory_space<vmem>>, vector<128x128xbf16>
      tpu.vector_store %arg5[%c0_14, %c0_15], %15 {strides = array<i32>} : memref<128x128xbf16, #tpu.memory_space<vmem>>, vector<128x128xbf16>,
    } else {
    }
    return
  }
  func.func @transform_0(%arg0: i32, %arg1: i32) -> (i32, i32) {
    %c0_i32 = arith.constant 0 : i32
    return %arg0, %arg1 : i32, i32
  }
  func.func @transform_1(%arg0: i32, %arg1: i32) -> (i32, i32) {
    %c0_i32 = arith.constant 0 : i32
    %c0_i32_0 = arith.constant 0 : i32
    return %arg1, %c0_i32 : i32, i32
  }
  func.func @transform_2(%arg0: i32, %arg1: i32) -> (i32, i32) {
    %c0_i32 = arith.constant 0 : i32
    %c0_i32_0 = arith.constant 0 : i32
    return %arg0, %c0_i32 : i32, i32
  }
  func.func @transform_3(%arg0: i32, %arg1: i32) -> (i32, i32) {
    %c0_i32 = arith.constant 0 : i32
    %c0_i32_0 = arith.constant 0 : i32
    return %arg0, %c0_i32 : i32, i32
  }
}

</mosaic_0001>

<llo_original>
// kernel: sage_forward.5
$region0: #{sage_forward.5}
  #allocation0 [shape = 'u32[]', space=smem, size = 0x4, offset = 0x4, fixed_abs, tag = 'smem constant byte address 0x4 - core index']
  #allocation1 [shape = 'u32[144,128]{1,0:T(1,128)}', space=vmem, size = 0x12000, scoped, tag = 'internal scratch']
  #allocation2 [shape = 'f32[128,128]{1,0:T(8,128)}', space=vmem, size = 0x10000, scoped, tag = 'scratch operand']
  %s0 = inlined_call_operand.vmem [shape: bf16[128,128], index: 0, kind: input, shape index: {}]
  %s1 = inlined_call_operand.vmem [shape: bf16[128,128], index: 1, kind: input, shape index: {}]
  %s2 = inlined_call_operand.vmem [shape: f32[128,128], index: 2, kind: input, shape index: {}]
  %s3 = inlined_call_operand.vmem [shape: bf16[128,128], index: 3, kind: output, shape index: {}]
  %s4 = sld [smem:[#allocation0]]
  $region30: #{sage_forward.5} parent=0
    _
  %s6 = ssub.s32 1, %s4
  %s7 = scalar_select 0, %s6, %s4
  // Predicated region
  $region2: #{sage_forward.5} parent=0 // pred_check
    _
  $region3: #{sage_forward.5} parent=0 // pred_check_branch
    %9 = sbr.rel (0) target = $region5
  $region4: #{sage_forward.5} parent=0 // pred_region
    _
  $region5: #{sage_forward.5} parent=0 // pred_fallthru
    _
  // Predicated region
  $region6: #{sage_forward.5} parent=0 // pred_check
    _
  $region7: #{sage_forward.5} parent=0 // pred_check_branch
    %11 = sbr.rel (0) target = $region9
  $region8: #{sage_forward.5} parent=0 // pred_region
    _
  $region9: #{sage_forward.5} parent=0 // pred_fallthru
    _
  // Predicated region
  $region10: #{sage_forward.5} parent=0 // pred_check
    _
  $region11: #{sage_forward.5} parent=0 // pred_check_branch
    %13 = sbr.rel (0) target = $region13
  $region12: #{sage_forward.5} parent=0 // pred_region
    _
  $region13: #{sage_forward.5} parent=0 // pred_fallthru
    _
  %p15 = scmp.eq.s32.totalorder 0, 0
  // Predicated region
  $region14: #{sage_forward.5} parent=0 // pred_check
    %p16 = pneg %p15
  $region15: #{sage_forward.5} parent=0 // pred_check_branch
    %18 = sbr.rel (%p16) target = $region17
  $region16: #{sage_forward.5} parent=0 // pred_region
    %19 = vst [vmem:[#allocation2] sm:$0xff] 0.0
    %20 = vst [vmem:[#allocation2 + $0x8] sm:$0xff] 0.0
    %21 = vst [vmem:[#allocation2 + $0x10] sm:$0xff] 0.0
    %22 = vst [vmem:[#allocation2 + $0x18] sm:$0xff] 0.0
    %23 = vst [vmem:[#allocation2 + $0x20] sm:$0xff] 0.0
    %24 = vst [vmem:[#allocation2 + $0x28] sm:$0xff] 0.0
    %25 = vst [vmem:[#allocation2 + $0x30] sm:$0xff] 0.0
    %26 = vst [vmem:[#allocation2 + $0x38] sm:$0xff] 0.0
    %27 = vst [vmem:[#allocation2 + $0x40] sm:$0xff] 0.0
    %28 = vst [vmem:[#allocation2 + $0x48] sm:$0xff] 0.0
    %29 = vst [vmem:[#allocation2 + $0x50] sm:$0xff] 0.0
    %30 = vst [vmem:[#allocation2 + $0x58] sm:$0xff] 0.0
    %31 = vst [vmem:[#allocation2 + $0x60] sm:$0xff] 0.0
    %32 = vst [vmem:[#allocation2 + $0x68] sm:$0xff] 0.0
    %33 = vst [vmem:[#allocation2 + $0x70] sm:$0xff] 0.0
    %34 = vst [vmem:[#allocation2 + $0x78] sm:$0xff] 0.0
  $region17: #{sage_forward.5} parent=0 // pred_fallthru
    _
  %v35 = vld [vmem:[#allocation2] sm:$0xff]
  %v36 = vld [vmem:[#allocation2 + $0x8] sm:$0xff]
  %v37 = vld [vmem:[#allocation2 + $0x10] sm:$0xff]
  %v38 = vld [vmem:[#allocation2 + $0x18] sm:$0xff]
  %v39 = vld [vmem:[#allocation2 + $0x20] sm:$0xff]
  %v40 = vld [vmem:[#allocation2 + $0x28] sm:$0xff]
  %v41 = vld [vmem:[#allocation2 + $0x30] sm:$0xff]
  %v42 = vld [vmem:[#allocation2 + $0x38] sm:$0xff]
  %v43 = vld [vmem:[#allocation2 + $0x40] sm:$0xff]
  %v44 = vld [vmem:[#allocation2 + $0x48] sm:$0xff]
  %v45 = vld [vmem:[#allocation2 + $0x50] sm:$0xff]
  %v46 = vld [vmem:[#allocation2 + $0x58] sm:$0xff]
  %v47 = vld [vmem:[#allocation2 + $0x60] sm:$0xff]
  %v48 = vld [vmem:[#allocation2 + $0x68] sm:$0xff]
  %v49 = vld [vmem:[#allocation2 + $0x70] sm:$0xff]
  %v50 = vld [vmem:[#allocation2 + $0x78] sm:$0xff]
  %v51 = vld [vmem:[%s0] sm:$0xf]
  %v52 = vld [vmem:[%s0 + $0x4] sm:$0xf]
  %v53 = vld [vmem:[%s0 + $0x8] sm:$0xf]
  %v54 = vld [vmem:[%s0 + $0xc] sm:$0xf]
  %v55 = vld [vmem:[%s0 + $0x10] sm:$0xf]
  %v56 = vld [vmem:[%s0 + $0x14] sm:$0xf]
  %v57 = vld [vmem:[%s0 + $0x18] sm:$0xf]
  %v58 = vld [vmem:[%s0 + $0x1c] sm:$0xf]
  %v59 = vld [vmem:[%s0 + $0x20] sm:$0xf]
  %v60 = vld [vmem:[%s0 + $0x24] sm:$0xf]
  %v61 = vld [vmem:[%s0 + $0x28] sm:$0xf]
  %v62 = vld [vmem:[%s0 + $0x2c] sm:$0xf]
  %v63 = vld [vmem:[%s0 + $0x30] sm:$0xf]
  %v64 = vld [vmem:[%s0 + $0x34] sm:$0xf]
  %v65 = vld [vmem:[%s0 + $0x38] sm:$0xf]
  %v66 = vld [vmem:[%s0 + $0x3c] sm:$0xf]
  %v67 = vld [vmem:[%s1] sm:$0xf]
  %v68 = vld [vmem:[%s1 + $0x4] sm:$0xf]
  %v69 = vld [vmem:[%s1 + $0x8] sm:$0xf]
  %v70 = vld [vmem:[%s1 + $0xc] sm:$0xf]
  %v71 = vld [vmem:[%s1 + $0x10] sm:$0xf]
  %v72 = vld [vmem:[%s1 + $0x14] sm:$0xf]
  %v73 = vld [vmem:[%s1 + $0x18] sm:$0xf]
  %v74 = vld [vmem:[%s1 + $0x1c] sm:$0xf]
  %v75 = vld [vmem:[%s1 + $0x20] sm:$0xf]
  %v76 = vld [vmem:[%s1 + $0x24] sm:$0xf]
  %v77 = vld [vmem:[%s1 + $0x28] sm:$0xf]
  %v78 = vld [vmem:[%s1 + $0x2c] sm:$0xf]
  %v79 = vld [vmem:[%s1 + $0x30] sm:$0xf]
  %v80 = vld [vmem:[%s1 + $0x34] sm:$0xf]
  %v81 = vld [vmem:[%s1 + $0x38] sm:$0xf]
  %v82 = vld [vmem:[%s1 + $0x3c] sm:$0xf]
  %v99 = vunpack.c.l.b16 %v51
  %v100 = vunpack.c.l.b16 %v52
  %v101 = vunpack.c.l.b16 %v53
  %v102 = vunpack.c.l.b16 %v54
  %v103 = vunpack.c.l.b16 %v55
  %v104 = vunpack.c.l.b16 %v56
  %v105 = vunpack.c.l.b16 %v57
  %v106 = vunpack.c.l.b16 %v58
  %v107 = vunpack.c.l.b16 %v59
  %v108 = vunpack.c.l.b16 %v60
  %v109 = vunpack.c.l.b16 %v61
  %v110 = vunpack.c.l.b16 %v62
  %v111 = vunpack.c.l.b16 %v63
  %v112 = vunpack.c.l.b16 %v64
  %v113 = vunpack.c.l.b16 %v65
  %v114 = vunpack.c.l.b16 %v66
  %v115 = vpack.c.b16 %v100, %v99
  %v116 = vpack.c.b16 %v102, %v101
  %v117 = vpack.c.b16 %v104, %v103
  %v118 = vpack.c.b16 %v106, %v105
  %v119 = vpack.c.b16 %v108, %v107
  %v120 = vpack.c.b16 %v110, %v109
  %v121 = vpack.c.b16 %v112, %v111
  %v122 = vpack.c.b16 %v114, %v113
  %v147 = vunpack.c.l.b16 %v67
  %v148 = vunpack.c.l.b16 %v68
  %v149 = vunpack.c.l.b16 %v69
  %v150 = vunpack.c.l.b16 %v70
  %v151 = vunpack.c.l.b16 %v71
  %v152 = vunpack.c.l.b16 %v72
  %v153 = vunpack.c.l.b16 %v73
  %v154 = vunpack.c.l.b16 %v74
  %v155 = vunpack.c.l.b16 %v75
  %v156 = vunpack.c.l.b16 %v76
  %v157 = vunpack.c.l.b16 %v77
  %v158 = vunpack.c.l.b16 %v78
  %v159 = vunpack.c.l.b16 %v79
  %v160 = vunpack.c.l.b16 %v80
  %v161 = vunpack.c.l.b16 %v81
  %v162 = vunpack.c.l.b16 %v82
  %v163 = vpack.c.b16 %v148, %v147
  %v164 = vpack.c.b16 %v150, %v149
  %v165 = vpack.c.b16 %v152, %v151
  %v166 = vpack.c.b16 %v154, %v153
  %v167 = vpack.c.b16 %v156, %v155
  %v168 = vpack.c.b16 %v158, %v157
  %v169 = vpack.c.b16 %v160, %v159
  %v170 = vpack.c.b16 %v162, %v161
  %179 = vmatprep.subr.bf16.mxu0 0
  %180 = vmatpush1.bf16.msra.mxu0 %v170
  %181 = vmatprep.subr.bf16.mxu0 0
  %182 = vmatpush1.bf16.msra.mxu0 %v169
  %183 = vmatprep.subr.bf16.mxu0 0
  %184 = vmatpush1.bf16.msra.mxu0 %v168
  %185 = vmatprep.subr.bf16.mxu0 0
  %186 = vmatpush1.bf16.msra.mxu0 %v167
  %187 = vmatprep.subr.bf16.mxu0 0
  %188 = vmatpush1.bf16.msra.mxu0 %v166
  %189 = vmatprep.subr.bf16.mxu0 0
  %190 = vmatpush1.bf16.msra.mxu0 %v165
  %191 = vmatprep.subr.bf16.mxu0 0
  %192 = vmatpush1.bf16.msra.mxu0 %v164
  %193 = vmatprep.subr.bf16.mxu0 0
  %194 = vmatpush1.bf16.msra.mxu0 %v163
  %195 = vmatprep.subr.bf16.mxu0 0
  %196 = vmatpush2.bf16.msra.mxu0 0
  %197 = vmatprep.subr.bf16.mxu0 0
  %198 = vmatpush2.bf16.msra.mxu0 0
  %199 = vmatprep.subr.bf16.mxu0 0
  %200 = vmatpush2.bf16.msra.mxu0 0
  %201 = vmatprep.subr.bf16.mxu0 0
  %202 = vmatpush2.bf16.msra.mxu0 0
  %203 = vmatprep.subr.bf16.mxu0 0
  %204 = vmatpush2.bf16.msra.mxu0 0
  %205 = vmatprep.subr.bf16.mxu0 0
  %206 = vmatpush2.bf16.msra.mxu0 0
  %207 = vmatprep.subr.bf16.mxu0 0
  %208 = vmatpush2.bf16.msra.mxu0 0
  %209 = vmatprep.subr.bf16.mxu0 0
  %210 = vmatpush2.bf16.msra.mxu0 0
  %211 = vmatprep.mubr.bf16.mxu0 0
  %212 = vmatmul.mubr.bf16.gmra.mxu0 %v115
  %v213 = vpop.f32.mrf.mxu0
  %v214 = vadd.f32 0.0, %v213
  %v215 = vpop.f32.mrf.mxu0
  %v216 = vpop.f32.mrf.mxu0
  %v217 = vadd.f32 0.0, %v216
  %v218 = vpop.f32.mrf.mxu0
  %219 = vmatprep.mubr.bf16.mxu0 0
  %220 = vmatmul.mubr.bf16.gmra.mxu0 %v116
  %v221 = vpop.f32.mrf.mxu0
  %v222 = vadd.f32 0.0, %v221
  %v223 = vpop.f32.mrf.mxu0
  %v224 = vpop.f32.mrf.mxu0
  %v225 = vadd.f32 0.0, %v224
  %v226 = vpop.f32.mrf.mxu0
  %227 = vmatprep.mubr.bf16.mxu0 0
  %228 = vmatmul.mubr.bf16.gmra.mxu0 %v117
  %v229 = vpop.f32.mrf.mxu0
  %v230 = vadd.f32 0.0, %v229
  %v231 = vpop.f32.mrf.mxu0
  %v232 = vpop.f32.mrf.mxu0
  %v233 = vadd.f32 0.0, %v232
  %v234 = vpop.f32.mrf.mxu0
  %235 = vmatprep.mubr.bf16.mxu0 0
  %236 = vmatmul.mubr.bf16.gmra.mxu0 %v118
  %v237 = vpop.f32.mrf.mxu0
  %v238 = vadd.f32 0.0, %v237
  %v239 = vpop.f32.mrf.mxu0
  %v240 = vpop.f32.mrf.mxu0
  %v241 = vadd.f32 0.0, %v240
  %v242 = vpop.f32.mrf.mxu0
  %243 = vmatprep.mubr.bf16.mxu0 0
  %244 = vmatmul.mubr.bf16.gmra.mxu0 %v119
  %v245 = vpop.f32.mrf.mxu0
  %v246 = vadd.f32 0.0, %v245
  %v247 = vpop.f32.mrf.mxu0
  %v248 = vpop.f32.mrf.mxu0
  %v249 = vadd.f32 0.0, %v248
  %v250 = vpop.f32.mrf.mxu0
  %251 = vmatprep.mubr.bf16.mxu0 0
  %252 = vmatmul.mubr.bf16.gmra.mxu0 %v120
  %v253 = vpop.f32.mrf.mxu0
  %v254 = vadd.f32 0.0, %v253
  %v255 = vpop.f32.mrf.mxu0
  %v256 = vpop.f32.mrf.mxu0
  %v257 = vadd.f32 0.0, %v256
  %v258 = vpop.f32.mrf.mxu0
  %259 = vmatprep.mubr.bf16.mxu0 0
  %260 = vmatmul.mubr.bf16.gmra.mxu0 %v121
  %v261 = vpop.f32.mrf.mxu0
  %v262 = vadd.f32 0.0, %v261
  %v263 = vpop.f32.mrf.mxu0
  %v264 = vpop.f32.mrf.mxu0
  %v265 = vadd.f32 0.0, %v264
  %v266 = vpop.f32.mrf.mxu0
  %267 = vmatprep.mubr.bf16.mxu0 0
  %268 = vmatmul.mubr.bf16.gmra.mxu0 %v122
  %v269 = vpop.f32.mrf.mxu0
  %v270 = vadd.f32 0.0, %v269
  %v271 = vpop.f32.mrf.mxu0
  %v272 = vpop.f32.mrf.mxu0
  %v273 = vadd.f32 0.0, %v272
  %v274 = vpop.f32.mrf.mxu0
  %275 = vdwg.mxu0
  %v276 = vadd.f32 %v35, %v214
  %v277 = vadd.f32 %v36, %v217
  %v278 = vadd.f32 %v37, %v222
  %v279 = vadd.f32 %v38, %v225
  %v280 = vadd.f32 %v39, %v230
  %v281 = vadd.f32 %v40, %v233
  %v282 = vadd.f32 %v41, %v238
  %v283 = vadd.f32 %v42, %v241
  %v284 = vadd.f32 %v43, %v246
  %v285 = vadd.f32 %v44, %v249
  %v286 = vadd.f32 %v45, %v254
  %v287 = vadd.f32 %v46, %v257
  %v288 = vadd.f32 %v47, %v262
  %v289 = vadd.f32 %v48, %v265
  %v290 = vadd.f32 %v49, %v270
  %v291 = vadd.f32 %v50, %v273
  %292 = vst [vmem:[#allocation2] sm:$0xff] %v276
  %293 = vst [vmem:[#allocation2 + $0x8] sm:$0xff] %v277
  %294 = vst [vmem:[#allocation2 + $0x10] sm:$0xff] %v278
  %295 = vst [vmem:[#allocation2 + $0x18] sm:$0xff] %v279
  %296 = vst [vmem:[#allocation2 + $0x20] sm:$0xff] %v280
  %297 = vst [vmem:[#allocation2 + $0x28] sm:$0xff] %v281
  %298 = vst [vmem:[#allocation2 + $0x30] sm:$0xff] %v282
  %299 = vst [vmem:[#allocation2 + $0x38] sm:$0xff] %v283
  %300 = vst [vmem:[#allocation2 + $0x40] sm:$0xff] %v284
  %301 = vst [vmem:[#allocation2 + $0x48] sm:$0xff] %v285
  %302 = vst [vmem:[#allocation2 + $0x50] sm:$0xff] %v286
  %303 = vst [vmem:[#allocation2 + $0x58] sm:$0xff] %v287
  %304 = vst [vmem:[#allocation2 + $0x60] sm:$0xff] %v288
  %305 = vst [vmem:[#allocation2 + $0x68] sm:$0xff] %v289
  %306 = vst [vmem:[#allocation2 + $0x70] sm:$0xff] %v290
  %307 = vst [vmem:[#allocation2 + $0x78] sm:$0xff] %v291
  // Predicated region
  $region18: #{sage_forward.5} parent=0 // pred_check
    %p308 = pneg %p15
  $region19: #{sage_forward.5} parent=0 // pred_check_branch
    %310 = sbr.rel (%p308) target = $region21
  $region20: #{sage_forward.5} parent=0 // pred_region
    %v311 = vld [vmem:[#allocation2] sm:$0xff]
    %v312 = vld [vmem:[#allocation2 + $0x8] sm:$0xff]
    %v313 = vld [vmem:[#allocation2 + $0x10] sm:$0xff]
    %v314 = vld [vmem:[#allocation2 + $0x18] sm:$0xff]
    %v315 = vld [vmem:[#allocation2 + $0x20] sm:$0xff]
    %v316 = vld [vmem:[#allocation2 + $0x28] sm:$0xff]
    %v317 = vld [vmem:[#allocation2 + $0x30] sm:$0xff]
    %v318 = vld [vmem:[#allocation2 + $0x38] sm:$0xff]
    %v319 = vld [vmem:[#allocation2 + $0x40] sm:$0xff]
    %v320 = vld [vmem:[#allocation2 + $0x48] sm:$0xff]
    %v321 = vld [vmem:[#allocation2 + $0x50] sm:$0xff]
    %v322 = vld [vmem:[#allocation2 + $0x58] sm:$0xff]
    %v323 = vld [vmem:[#allocation2 + $0x60] sm:$0xff]
    %v324 = vld [vmem:[#allocation2 + $0x68] sm:$0xff]
    %v325 = vld [vmem:[#allocation2 + $0x70] sm:$0xff]
    %v326 = vld [vmem:[#allocation2 + $0x78] sm:$0xff]
    %v327 = vld [vmem:[%s2] sm:$0xff]
    %v328 = vld [vmem:[%s2 + $0x8] sm:$0xff]
    %v329 = vld [vmem:[%s2 + $0x10] sm:$0xff]
    %v330 = vld [vmem:[%s2 + $0x18] sm:$0xff]
    %v331 = vld [vmem:[%s2 + $0x20] sm:$0xff]
    %v332 = vld [vmem:[%s2 + $0x28] sm:$0xff]
    %v333 = vld [vmem:[%s2 + $0x30] sm:$0xff]
    %v334 = vld [vmem:[%s2 + $0x38] sm:$0xff]
    %v335 = vld [vmem:[%s2 + $0x40] sm:$0xff]
    %v336 = vld [vmem:[%s2 + $0x48] sm:$0xff]
    %v337 = vld [vmem:[%s2 + $0x50] sm:$0xff]
    %v338 = vld [vmem:[%s2 + $0x58] sm:$0xff]
    %v339 = vld [vmem:[%s2 + $0x60] sm:$0xff]
    %v340 = vld [vmem:[%s2 + $0x68] sm:$0xff]
    %v341 = vld [vmem:[%s2 + $0x70] sm:$0xff]
    %v342 = vld [vmem:[%s2 + $0x78] sm:$0xff]
    %v343 = vadd.f32 %v311, %v327
    %v344 = vadd.f32 %v312, %v328
    %v345 = vadd.f32 %v313, %v329
    %v346 = vadd.f32 %v314, %v330
    %v347 = vadd.f32 %v315, %v331
    %v348 = vadd.f32 %v316, %v332
    %v349 = vadd.f32 %v317, %v333
    %v350 = vadd.f32 %v318, %v334
    %v351 = vadd.f32 %v319, %v335
    %v352 = vadd.f32 %v320, %v336
    %v353 = vadd.f32 %v321, %v337
    %v354 = vadd.f32 %v322, %v338
    %v355 = vadd.f32 %v323, %v339
    %v356 = vadd.f32 %v324, %v340
    %v357 = vadd.f32 %v325, %v341
    %v358 = vadd.f32 %v326, %v342
    %v359 = vmax.f32 %v343, 0.0
    %v360 = vmax.f32 %v344, 0.0
    %v361 = vmax.f32 %v345, 0.0
    %v362 = vmax.f32 %v346, 0.0
    %v363 = vmax.f32 %v347, 0.0
    %v364 = vmax.f32 %v348, 0.0
    %v365 = vmax.f32 %v349, 0.0
    %v366 = vmax.f32 %v350, 0.0
    %v367 = vmax.f32 %v351, 0.0
    %v368 = vmax.f32 %v352, 0.0
    %v369 = vmax.f32 %v353, 0.0
    %v370 = vmax.f32 %v354, 0.0
    %v371 = vmax.f32 %v355, 0.0
    %v372 = vmax.f32 %v356, 0.0
    %v373 = vmax.f32 %v357, 0.0
    %v374 = vmax.f32 %v358, 0.0
    %v375 = vpack.c.bf16 %v360, %v359
    %v376 = vpack.c.bf16 %v362, %v361
    %v377 = vpack.c.bf16 %v364, %v363
    %v378 = vpack.c.bf16 %v366, %v365
    %v379 = vpack.c.bf16 %v368, %v367
    %v380 = vpack.c.bf16 %v370, %v369
    %v381 = vpack.c.bf16 %v372, %v371
    %v382 = vpack.c.bf16 %v374, %v373
    %v391 = vunpack.c.l.b16 %v375
    %v392 = vunpack.c.h.b16 %v375
    %v393 = vunpack.c.l.b16 %v376
    %v394 = vunpack.c.h.b16 %v376
    %v395 = vunpack.c.l.b16 %v377
    %v396 = vunpack.c.h.b16 %v377
    %v397 = vunpack.c.l.b16 %v378
    %v398 = vunpack.c.h.b16 %v378
    %v399 = vunpack.c.l.b16 %v379
    %v400 = vunpack.c.h.b16 %v379
    %v401 = vunpack.c.l.b16 %v380
    %v402 = vunpack.c.h.b16 %v380
    %v403 = vunpack.c.l.b16 %v381
    %v404 = vunpack.c.h.b16 %v381
    %v405 = vunpack.c.l.b16 %v382
    %v406 = vunpack.c.h.b16 %v382
    %v407 = vpack.c.b16 %v391, %v391
    %v408 = vpack.c.b16 %v392, %v392
    %v409 = vpack.c.b16 %v393, %v393
    %v410 = vpack.c.b16 %v394, %v394
    %v411 = vpack.c.b16 %v395, %v395
    %v412 = vpack.c.b16 %v396, %v396
    %v413 = vpack.c.b16 %v397, %v397
    %v414 = vpack.c.b16 %v398, %v398
    %v415 = vpack.c.b16 %v399, %v399
    %v416 = vpack.c.b16 %v400, %v400
    %v417 = vpack.c.b16 %v401, %v401
    %v418 = vpack.c.b16 %v402, %v402
    %v419 = vpack.c.b16 %v403, %v403
    %v420 = vpack.c.b16 %v404, %v404
    %v421 = vpack.c.b16 %v405, %v405
    %v422 = vpack.c.b16 %v406, %v406
    %439 = vst [vmem:[%s3] sm:$0xf] %v407
    %440 = vst [vmem:[%s3 + $0x4] sm:$0xf] %v408
    %441 = vst [vmem:[%s3 + $0x8] sm:$0xf] %v409
    %442 = vst [vmem:[%s3 + $0xc] sm:$0xf] %v410
    %443 = vst [vmem:[%s3 + $0x10] sm:$0xf] %v411
    %444 = vst [vmem:[%s3 + $0x14] sm:$0xf] %v412
    %445 = vst [vmem:[%s3 + $0x18] sm:$0xf] %v413
    %446 = vst [vmem:[%s3 + $0x1c] sm:$0xf] %v414
    %447 = vst [vmem:[%s3 + $0x20] sm:$0xf] %v415
    %448 = vst [vmem:[%s3 + $0x24] sm:$0xf] %v416
    %449 = vst [vmem:[%s3 + $0x28] sm:$0xf] %v417
    %450 = vst [vmem:[%s3 + $0x2c] sm:$0xf] %v418
    %451 = vst [vmem:[%s3 + $0x30] sm:$0xf] %v419
    %452 = vst [vmem:[%s3 + $0x34] sm:$0xf] %v420
    %453 = vst [vmem:[%s3 + $0x38] sm:$0xf] %v421
    %454 = vst [vmem:[%s3 + $0x3c] sm:$0xf] %v422
  $region21: #{sage_forward.5} parent=0 // pred_fallthru
    _
  // Predicated region
  $region22: #{sage_forward.5} parent=0 // pred_check
    _
  $region23: #{sage_forward.5} parent=0 // pred_check_branch
    %456 = sbr.rel (0) target = $region25
  $region24: #{sage_forward.5} parent=0 // pred_region
    _
  $region25: #{sage_forward.5} parent=0 // pred_fallthru
    _
  // Predicated region
  $region26: #{sage_forward.5} parent=0 // pred_check
    _
  $region27: #{sage_forward.5} parent=0 // pred_check_branch
    %458 = sbr.rel (0) target = $region29
  $region28: #{sage_forward.5} parent=0 // pred_region
    _
  $region29: #{sage_forward.5} parent=0 // pred_fallthru
    _

// kernel: sage_forward.4
$region0: #{sage_forward.4}
  #allocation0 [shape = 'u32[]', space=smem, size = 0x4, offset = 0x4, fixed_abs, tag = 'smem constant byte address 0x4 - core index']
  #allocation1 [shape = 'u32[144,128]{1,0:T(1,128)}', space=vmem, size = 0x12000, scoped, tag = 'internal scratch']
  %s0 = inlined_call_operand.vmem [shape: bf16[128,128], index: 0, kind: input, shape index: {}]
  %s1 = inlined_call_operand.vmem [shape: bf16[128,128], index: 1, kind: input, shape index: {}]
  %s2 = inlined_call_operand.vmem [shape: bf16[128,128], index: 2, kind: input, shape index: {}]
  %s3 = inlined_call_operand.vmem [shape: f32[1,128], index: 3, kind: input, shape index: {}]
  %s4 = inlined_call_operand.vmem [shape: bf16[128,128], index: 4, kind: output, shape index: {0}]
  %s5 = inlined_call_operand.vmem [shape: f32[128,128], index: 5, kind: output, shape index: {1}]
  %6 = xla_tuple %s4, %s5
  %s7 = sld [smem:[#allocation0]]
  $region34: #{sage_forward.4} parent=0
    _
  %s9 = ssub.s32 1, %s7
  %s10 = scalar_select 0, %s9, %s7
  // Predicated region
  $region2: #{sage_forward.4} parent=0 // pred_check
    _
  $region3: #{sage_forward.4} parent=0 // pred_check_branch
    %12 = sbr.rel (0) target = $region5
  $region4: #{sage_forward.4} parent=0 // pred_region
    _
  $region5: #{sage_forward.4} parent=0 // pred_fallthru
    _
  // Predicated region
  $region6: #{sage_forward.4} parent=0 // pred_check
    _
  $region7: #{sage_forward.4} parent=0 // pred_check_branch
    %14 = sbr.rel (0) target = $region9
  $region8: #{sage_forward.4} parent=0 // pred_region
    _
  $region9: #{sage_forward.4} parent=0 // pred_fallthru
    _
  // Predicated region
  $region10: #{sage_forward.4} parent=0 // pred_check
    _
  $region11: #{sage_forward.4} parent=0 // pred_check_branch
    %16 = sbr.rel (0) target = $region13
  $region12: #{sage_forward.4} parent=0 // pred_region
    _
  $region13: #{sage_forward.4} parent=0 // pred_fallthru
    _
  // Predicated region
  $region14: #{sage_forward.4} parent=0 // pred_check
    _
  $region15: #{sage_forward.4} parent=0 // pred_check_branch
    %18 = sbr.rel (0) target = $region17
  $region16: #{sage_forward.4} parent=0 // pred_region
    _
  $region17: #{sage_forward.4} parent=0 // pred_fallthru
    _
  %v20 = vld [vmem:[%s0] sm:$0xf]
  %v21 = vld [vmem:[%s0 + $0x4] sm:$0xf]
  %v22 = vld [vmem:[%s0 + $0x8] sm:$0xf]
  %v23 = vld [vmem:[%s0 + $0xc] sm:$0xf]
  %v24 = vld [vmem:[%s0 + $0x10] sm:$0xf]
  %v25 = vld [vmem:[%s0 + $0x14] sm:$0xf]
  %v26 = vld [vmem:[%s0 + $0x18] sm:$0xf]
  %v27 = vld [vmem:[%s0 + $0x1c] sm:$0xf]
  %v28 = vld [vmem:[%s0 + $0x20] sm:$0xf]
  %v29 = vld [vmem:[%s0 + $0x24] sm:$0xf]
  %v30 = vld [vmem:[%s0 + $0x28] sm:$0xf]
  %v31 = vld [vmem:[%s0 + $0x2c] sm:$0xf]
  %v32 = vld [vmem:[%s0 + $0x30] sm:$0xf]
  %v33 = vld [vmem:[%s0 + $0x34] sm:$0xf]
  %v34 = vld [vmem:[%s0 + $0x38] sm:$0xf]
  %v35 = vld [vmem:[%s0 + $0x3c] sm:$0xf]
  %v36 = vld [vmem:[%s1] sm:$0xf]
  %v37 = vld [vmem:[%s1 + $0x4] sm:$0xf]
  %v38 = vld [vmem:[%s1 + $0x8] sm:$0xf]
  %v39 = vld [vmem:[%s1 + $0xc] sm:$0xf]
  %v40 = vld [vmem:[%s1 + $0x10] sm:$0xf]
  %v41 = vld [vmem:[%s1 + $0x14] sm:$0xf]
  %v42 = vld [vmem:[%s1 + $0x18] sm:$0xf]
  %v43 = vld [vmem:[%s1 + $0x1c] sm:$0xf]
  %v44 = vld [vmem:[%s1 + $0x20] sm:$0xf]
  %v45 = vld [vmem:[%s1 + $0x24] sm:$0xf]
  %v46 = vld [vmem:[%s1 + $0x28] sm:$0xf]
  %v47 = vld [vmem:[%s1 + $0x2c] sm:$0xf]
  %v48 = vld [vmem:[%s1 + $0x30] sm:$0xf]
  %v49 = vld [vmem:[%s1 + $0x34] sm:$0xf]
  %v50 = vld [vmem:[%s1 + $0x38] sm:$0xf]
  %v51 = vld [vmem:[%s1 + $0x3c] sm:$0xf]
  %v68 = vunpack.c.l.b16 %v20
  %v69 = vunpack.c.l.b16 %v21
  %v70 = vunpack.c.l.b16 %v22
  %v71 = vunpack.c.l.b16 %v23
  %v72 = vunpack.c.l.b16 %v24
  %v73 = vunpack.c.l.b16 %v25
  %v74 = vunpack.c.l.b16 %v26
  %v75 = vunpack.c.l.b16 %v27
  %v76 = vunpack.c.l.b16 %v28
  %v77 = vunpack.c.l.b16 %v29
  %v78 = vunpack.c.l.b16 %v30
  %v79 = vunpack.c.l.b16 %v31
  %v80 = vunpack.c.l.b16 %v32
  %v81 = vunpack.c.l.b16 %v33
  %v82 = vunpack.c.l.b16 %v34
  %v83 = vunpack.c.l.b16 %v35
  %v84 = vpack.c.b16 %v69, %v68
  %v85 = vpack.c.b16 %v71, %v70
  %v86 = vpack.c.b16 %v73, %v72
  %v87 = vpack.c.b16 %v75, %v74
  %v88 = vpack.c.b16 %v77, %v76
  %v89 = vpack.c.b16 %v79, %v78
  %v90 = vpack.c.b16 %v81, %v80
  %v91 = vpack.c.b16 %v83, %v82
  %v116 = vunpack.c.l.b16 %v36
  %v117 = vunpack.c.l.b16 %v37
  %v118 = vunpack.c.l.b16 %v38
  %v119 = vunpack.c.l.b16 %v39
  %v120 = vunpack.c.l.b16 %v40
  %v121 = vunpack.c.l.b16 %v41
  %v122 = vunpack.c.l.b16 %v42
  %v123 = vunpack.c.l.b16 %v43
  %v124 = vunpack.c.l.b16 %v44
  %v125 = vunpack.c.l.b16 %v45
  %v126 = vunpack.c.l.b16 %v46
  %v127 = vunpack.c.l.b16 %v47
  %v128 = vunpack.c.l.b16 %v48
  %v129 = vunpack.c.l.b16 %v49
  %v130 = vunpack.c.l.b16 %v50
  %v131 = vunpack.c.l.b16 %v51
  %v132 = vpack.c.b16 %v117, %v116
  %v133 = vpack.c.b16 %v119, %v118
  %v134 = vpack.c.b16 %v121, %v120
  %v135 = vpack.c.b16 %v123, %v122
  %v136 = vpack.c.b16 %v125, %v124
  %v137 = vpack.c.b16 %v127, %v126
  %v138 = vpack.c.b16 %v129, %v128
  %v139 = vpack.c.b16 %v131, %v130
  %148 = vmatprep.subr.bf16.mxu0 0
  %149 = vmatpush1.bf16.msra.mxu0 %v139
  %150 = vmatprep.subr.bf16.mxu0 0
  %151 = vmatpush1.bf16.msra.mxu0 %v138
  %152 = vmatprep.subr.bf16.mxu0 0
  %153 = vmatpush1.bf16.msra.mxu0 %v137
  %154 = vmatprep.subr.bf16.mxu0 0
  %155 = vmatpush1.bf16.msra.mxu0 %v136
  %156 = vmatprep.subr.bf16.mxu0 0
  %157 = vmatpush1.bf16.msra.mxu0 %v135
  %158 = vmatprep.subr.bf16.mxu0 0
  %159 = vmatpush1.bf16.msra.mxu0 %v134
  %160 = vmatprep.subr.bf16.mxu0 0
  %161 = vmatpush1.bf16.msra.mxu0 %v133
  %162 = vmatprep.subr.bf16.mxu0 0
  %163 = vmatpush1.bf16.msra.mxu0 %v132
  %164 = vmatprep.subr.bf16.mxu0 0
  %165 = vmatpush2.bf16.msra.mxu0 0
  %166 = vmatprep.subr.bf16.mxu0 0
  %167 = vmatpush2.bf16.msra.mxu0 0
  %168 = vmatprep.subr.bf16.mxu0 0
  %169 = vmatpush2.bf16.msra.mxu0 0
  %170 = vmatprep.subr.bf16.mxu0 0
  %171 = vmatpush2.bf16.msra.mxu0 0
  %172 = vmatprep.subr.bf16.mxu0 0
  %173 = vmatpush2.bf16.msra.mxu0 0
  %174 = vmatprep.subr.bf16.mxu0 0
  %175 = vmatpush2.bf16.msra.mxu0 0
  %176 = vmatprep.subr.bf16.mxu0 0
  %177 = vmatpush2.bf16.msra.mxu0 0
  %178 = vmatprep.subr.bf16.mxu0 0
  %179 = vmatpush2.bf16.msra.mxu0 0
  %180 = vmatprep.mubr.bf16.mxu0 0
  %181 = vmatmul.mubr.bf16.gmra.mxu0 %v84
  %v182 = vpop.f32.mrf.mxu0
  %v183 = vadd.f32 0.0, %v182
  %v184 = vpop.f32.mrf.mxu0
  %v185 = vpop.f32.mrf.mxu0
  %v186 = vadd.f32 0.0, %v185
  %v187 = vpop.f32.mrf.mxu0
  %188 = vmatprep.mubr.bf16.mxu0 0
  %189 = vmatmul.mubr.bf16.gmra.mxu0 %v85
  %v190 = vpop.f32.mrf.mxu0
  %v191 = vadd.f32 0.0, %v190
  %v192 = vpop.f32.mrf.mxu0
  %v193 = vpop.f32.mrf.mxu0
  %v194 = vadd.f32 0.0, %v193
  %v195 = vpop.f32.mrf.mxu0
  %196 = vmatprep.mubr.bf16.mxu0 0
  %197 = vmatmul.mubr.bf16.gmra.mxu0 %v86
  %v198 = vpop.f32.mrf.mxu0
  %v199 = vadd.f32 0.0, %v198
  %v200 = vpop.f32.mrf.mxu0
  %v201 = vpop.f32.mrf.mxu0
  %v202 = vadd.f32 0.0, %v201
  %v203 = vpop.f32.mrf.mxu0
  %204 = vmatprep.mubr.bf16.mxu0 0
  %205 = vmatmul.mubr.bf16.gmra.mxu0 %v87
  %v206 = vpop.f32.mrf.mxu0
  %v207 = vadd.f32 0.0, %v206
  %v208 = vpop.f32.mrf.mxu0
  %v209 = vpop.f32.mrf.mxu0
  %v210 = vadd.f32 0.0, %v209
  %v211 = vpop.f32.mrf.mxu0
  %212 = vmatprep.mubr.bf16.mxu0 0
  %213 = vmatmul.mubr.bf16.gmra.mxu0 %v88
  %v214 = vpop.f32.mrf.mxu0
  %v215 = vadd.f32 0.0, %v214
  %v216 = vpop.f32.mrf.mxu0
  %v217 = vpop.f32.mrf.mxu0
  %v218 = vadd.f32 0.0, %v217
  %v219 = vpop.f32.mrf.mxu0
  %220 = vmatprep.mubr.bf16.mxu0 0
  %221 = vmatmul.mubr.bf16.gmra.mxu0 %v89
  %v222 = vpop.f32.mrf.mxu0
  %v223 = vadd.f32 0.0, %v222
  %v224 = vpop.f32.mrf.mxu0
  %v225 = vpop.f32.mrf.mxu0
  %v226 = vadd.f32 0.0, %v225
  %v227 = vpop.f32.mrf.mxu0
  %228 = vmatprep.mubr.bf16.mxu0 0
  %229 = vmatmul.mubr.bf16.gmra.mxu0 %v90
  %v230 = vpop.f32.mrf.mxu0
  %v231 = vadd.f32 0.0, %v230
  %v232 = vpop.f32.mrf.mxu0
  %v233 = vpop.f32.mrf.mxu0
  %v234 = vadd.f32 0.0, %v233
  %v235 = vpop.f32.mrf.mxu0
  %236 = vmatprep.mubr.bf16.mxu0 0
  %237 = vmatmul.mubr.bf16.gmra.mxu0 %v91
  %v238 = vpop.f32.mrf.mxu0
  %v239 = vadd.f32 0.0, %v238
  %v240 = vpop.f32.mrf.mxu0
  %v241 = vpop.f32.mrf.mxu0
  %v242 = vadd.f32 0.0, %v241
  %v243 = vpop.f32.mrf.mxu0
  %244 = vdwg.mxu0
  %v245 = vpack.c.bf16 %v186, %v183
  %v246 = vpack.c.bf16 %v194, %v191
  %v247 = vpack.c.bf16 %v202, %v199
  %v248 = vpack.c.bf16 %v210, %v207
  %v249 = vpack.c.bf16 %v218, %v215
  %v250 = vpack.c.bf16 %v226, %v223
  %v251 = vpack.c.bf16 %v234, %v231
  %v252 = vpack.c.bf16 %v242, %v239
  %v261 = vunpack.c.l.b16 %v245
  %v262 = vunpack.c.h.b16 %v245
  %v263 = vunpack.c.l.b16 %v246
  %v264 = vunpack.c.h.b16 %v246
  %v265 = vunpack.c.l.b16 %v247
  %v266 = vunpack.c.h.b16 %v247
  %v267 = vunpack.c.l.b16 %v248
  %v268 = vunpack.c.h.b16 %v248
  %v269 = vunpack.c.l.b16 %v249
  %v270 = vunpack.c.h.b16 %v249
  %v271 = vunpack.c.l.b16 %v250
  %v272 = vunpack.c.h.b16 %v250
  %v273 = vunpack.c.l.b16 %v251
  %v274 = vunpack.c.h.b16 %v251
  %v275 = vunpack.c.l.b16 %v252
  %v276 = vunpack.c.h.b16 %v252
  %v277 = vpack.c.b16 %v261, %v261
  %v278 = vpack.c.b16 %v262, %v262
  %v279 = vpack.c.b16 %v263, %v263
  %v280 = vpack.c.b16 %v264, %v264
  %v281 = vpack.c.b16 %v265, %v265
  %v282 = vpack.c.b16 %v266, %v266
  %v283 = vpack.c.b16 %v267, %v267
  %v284 = vpack.c.b16 %v268, %v268
  %v285 = vpack.c.b16 %v269, %v269
  %v286 = vpack.c.b16 %v270, %v270
  %v287 = vpack.c.b16 %v271, %v271
  %v288 = vpack.c.b16 %v272, %v272
  %v289 = vpack.c.b16 %v273, %v273
  %v290 = vpack.c.b16 %v274, %v274
  %v291 = vpack.c.b16 %v275, %v275
  %v292 = vpack.c.b16 %v276, %v276
  %309 = vst [vmem:[%s4] sm:$0xf] %v277
  %310 = vst [vmem:[%s4 + $0x4] sm:$0xf] %v278
  %311 = vst [vmem:[%s4 + $0x8] sm:$0xf] %v279
  %312 = vst [vmem:[%s4 + $0xc] sm:$0xf] %v280
  %313 = vst [vmem:[%s4 + $0x10] sm:$0xf] %v281
  %314 = vst [vmem:[%s4 + $0x14] sm:$0xf] %v282
  %315 = vst [vmem:[%s4 + $0x18] sm:$0xf] %v283
  %316 = vst [vmem:[%s4 + $0x1c] sm:$0xf] %v284
  %317 = vst [vmem:[%s4 + $0x20] sm:$0xf] %v285
  %318 = vst [vmem:[%s4 + $0x24] sm:$0xf] %v286
  %319 = vst [vmem:[%s4 + $0x28] sm:$0xf] %v287
  %320 = vst [vmem:[%s4 + $0x2c] sm:$0xf] %v288
  %321 = vst [vmem:[%s4 + $0x30] sm:$0xf] %v289
  %322 = vst [vmem:[%s4 + $0x34] sm:$0xf] %v290
  %323 = vst [vmem:[%s4 + $0x38] sm:$0xf] %v291
  %324 = vst [vmem:[%s4 + $0x3c] sm:$0xf] %v292
  %v325 = vld [vmem:[%s2] sm:$0xf]
  %v326 = vld [vmem:[%s2 + $0x4] sm:$0xf]
  %v327 = vld [vmem:[%s2 + $0x8] sm:$0xf]
  %v328 = vld [vmem:[%s2 + $0xc] sm:$0xf]
  %v329 = vld [vmem:[%s2 + $0x10] sm:$0xf]
  %v330 = vld [vmem:[%s2 + $0x14] sm:$0xf]
  %v331 = vld [vmem:[%s2 + $0x18] sm:$0xf]
  %v332 = vld [vmem:[%s2 + $0x1c] sm:$0xf]
  %v333 = vld [vmem:[%s2 + $0x20] sm:$0xf]
  %v334 = vld [vmem:[%s2 + $0x24] sm:$0xf]
  %v335 = vld [vmem:[%s2 + $0x28] sm:$0xf]
  %v336 = vld [vmem:[%s2 + $0x2c] sm:$0xf]
  %v337 = vld [vmem:[%s2 + $0x30] sm:$0xf]
  %v338 = vld [vmem:[%s2 + $0x34] sm:$0xf]
  %v339 = vld [vmem:[%s2 + $0x38] sm:$0xf]
  %v340 = vld [vmem:[%s2 + $0x3c] sm:$0xf]
  %v341 = vld [vmem:[%s3] sm:$0x1]
  %v343 = vlaneseq
  %v344 = vshrl.u32 %v343, 7
  %v345 = vsub.s32 0, %v344
  %v346 = vrot.slane %v341, %v345
  %v364 = vunpack.c.l.b16 %v325
  %v365 = vunpack.c.l.b16 %v326
  %v366 = vunpack.c.l.b16 %v327
  %v367 = vunpack.c.l.b16 %v328
  %v368 = vunpack.c.l.b16 %v329
  %v369 = vunpack.c.l.b16 %v330
  %v370 = vunpack.c.l.b16 %v331
  %v371 = vunpack.c.l.b16 %v332
  %v372 = vunpack.c.l.b16 %v333
  %v373 = vunpack.c.l.b16 %v334
  %v374 = vunpack.c.l.b16 %v335
  %v375 = vunpack.c.l.b16 %v336
  %v376 = vunpack.c.l.b16 %v337
  %v377 = vunpack.c.l.b16 %v338
  %v378 = vunpack.c.l.b16 %v339
  %v379 = vunpack.c.l.b16 %v340
  %v380 = vpack.c.b16 %v365, %v364
  %v381 = vpack.c.b16 %v367, %v366
  %v382 = vpack.c.b16 %v369, %v368
  %v383 = vpack.c.b16 %v371, %v370
  %v384 = vpack.c.b16 %v373, %v372
  %v385 = vpack.c.b16 %v375, %v374
  %v386 = vpack.c.b16 %v377, %v376
  %v387 = vpack.c.b16 %v379, %v378
  %396 = vmatprep.subr.bf16.mxu0 0
  %397 = vmatpush1.bf16.msra.mxu0 %v387
  %398 = vmatprep.subr.bf16.mxu0 0
  %399 = vmatpush1.bf16.msra.mxu0 %v386
  %400 = vmatprep.subr.bf16.mxu0 0
  %401 = vmatpush1.bf16.msra.mxu0 %v385
  %402 = vmatprep.subr.bf16.mxu0 0
  %403 = vmatpush1.bf16.msra.mxu0 %v384
  %404 = vmatprep.subr.bf16.mxu0 0
  %405 = vmatpush1.bf16.msra.mxu0 %v383
  %406 = vmatprep.subr.bf16.mxu0 0
  %407 = vmatpush1.bf16.msra.mxu0 %v382
  %408 = vmatprep.subr.bf16.mxu0 0
  %409 = vmatpush1.bf16.msra.mxu0 %v381
  %410 = vmatprep.subr.bf16.mxu0 0
  %411 = vmatpush1.bf16.msra.mxu0 %v380
  %412 = vmatprep.subr.bf16.mxu0 0
  %413 = vmatpush2.bf16.msra.mxu0 0
  %414 = vmatprep.subr.bf16.mxu0 0
  %415 = vmatpush2.bf16.msra.mxu0 0
  %416 = vmatprep.subr.bf16.mxu0 0
  %417 = vmatpush2.bf16.msra.mxu0 0
  %418 = vmatprep.subr.bf16.mxu0 0
  %419 = vmatpush2.bf16.msra.mxu0 0
  %420 = vmatprep.subr.bf16.mxu0 0
  %421 = vmatpush2.bf16.msra.mxu0 0
  %422 = vmatprep.subr.bf16.mxu0 0
  %423 = vmatpush2.bf16.msra.mxu0 0
  %424 = vmatprep.subr.bf16.mxu0 0
  %425 = vmatpush2.bf16.msra.mxu0 0
  %426 = vmatprep.subr.bf16.mxu0 0
  %427 = vmatpush2.bf16.msra.mxu0 0
  %428 = vmatprep.mubr.bf16.mxu0 0
  %429 = vmatmul.mubr.bf16.gmra.mxu0 %v84
  %v430 = vpop.f32.mrf.mxu0
  %v431 = vadd.f32 %v346, %v430
  %v432 = vpop.f32.mrf.mxu0
  %v433 = vpop.f32.mrf.mxu0
  %v434 = vadd.f32 %v346, %v433
  %v435 = vpop.f32.mrf.mxu0
  %436 = vmatprep.mubr.bf16.mxu0 0
  %437 = vmatmul.mubr.bf16.gmra.mxu0 %v85
  %v438 = vpop.f32.mrf.mxu0
  %v439 = vadd.f32 %v346, %v438
  %v440 = vpop.f32.mrf.mxu0
  %v441 = vpop.f32.mrf.mxu0
  %v442 = vadd.f32 %v346, %v441
  %v443 = vpop.f32.mrf.mxu0
  %444 = vmatprep.mubr.bf16.mxu0 0
  %445 = vmatmul.mubr.bf16.gmra.mxu0 %v86
  %v446 = vpop.f32.mrf.mxu0
  %v447 = vadd.f32 %v346, %v446
  %v448 = vpop.f32.mrf.mxu0
  %v449 = vpop.f32.mrf.mxu0
  %v450 = vadd.f32 %v346, %v449
  %v451 = vpop.f32.mrf.mxu0
  %452 = vmatprep.mubr.bf16.mxu0 0
  %453 = vmatmul.mubr.bf16.gmra.mxu0 %v87
  %v454 = vpop.f32.mrf.mxu0
  %v455 = vadd.f32 %v346, %v454
  %v456 = vpop.f32.mrf.mxu0
  %v457 = vpop.f32.mrf.mxu0
  %v458 = vadd.f32 %v346, %v457
  %v459 = vpop.f32.mrf.mxu0
  %460 = vmatprep.mubr.bf16.mxu0 0
  %461 = vmatmul.mubr.bf16.gmra.mxu0 %v88
  %v462 = vpop.f32.mrf.mxu0
  %v463 = vadd.f32 %v346, %v462
  %v464 = vpop.f32.mrf.mxu0
  %v465 = vpop.f32.mrf.mxu0
  %v466 = vadd.f32 %v346, %v465
  %v467 = vpop.f32.mrf.mxu0
  %468 = vmatprep.mubr.bf16.mxu0 0
  %469 = vmatmul.mubr.bf16.gmra.mxu0 %v89
  %v470 = vpop.f32.mrf.mxu0
  %v471 = vadd.f32 %v346, %v470
  %v472 = vpop.f32.mrf.mxu0
  %v473 = vpop.f32.mrf.mxu0
  %v474 = vadd.f32 %v346, %v473
  %v475 = vpop.f32.mrf.mxu0
  %476 = vmatprep.mubr.bf16.mxu0 0
  %477 = vmatmul.mubr.bf16.gmra.mxu0 %v90
  %v478 = vpop.f32.mrf.mxu0
  %v479 = vadd.f32 %v346, %v478
  %v480 = vpop.f32.mrf.mxu0
  %v481 = vpop.f32.mrf.mxu0
  %v482 = vadd.f32 %v346, %v481
  %v483 = vpop.f32.mrf.mxu0
  %484 = vmatprep.mubr.bf16.mxu0 0
  %485 = vmatmul.mubr.bf16.gmra.mxu0 %v91
  %v486 = vpop.f32.mrf.mxu0
  %v487 = vadd.f32 %v346, %v486
  %v488 = vpop.f32.mrf.mxu0
  %v489 = vpop.f32.mrf.mxu0
  %v490 = vadd.f32 %v346, %v489
  %v491 = vpop.f32.mrf.mxu0
  %492 = vdwg.mxu0
  %493 = vst [vmem:[%s5] sm:$0xff] %v431
  %494 = vst [vmem:[%s5 + $0x8] sm:$0xff] %v434
  %495 = vst [vmem:[%s5 + $0x10] sm:$0xff] %v439
  %496 = vst [vmem:[%s5 + $0x18] sm:$0xff] %v442
  %497 = vst [vmem:[%s5 + $0x20] sm:$0xff] %v447
  %498 = vst [vmem:[%s5 + $0x28] sm:$0xff] %v450
  %499 = vst [vmem:[%s5 + $0x30] sm:$0xff] %v455
  %500 = vst [vmem:[%s5 + $0x38] sm:$0xff] %v458
  %501 = vst [vmem:[%s5 + $0x40] sm:$0xff] %v463
  %502 = vst [vmem:[%s5 + $0x48] sm:$0xff] %v466
  %503 = vst [vmem:[%s5 + $0x50] sm:$0xff] %v471
  %504 = vst [vmem:[%s5 + $0x58] sm:$0xff] %v474
  %505 = vst [vmem:[%s5 + $0x60] sm:$0xff] %v479
  %506 = vst [vmem:[%s5 + $0x68] sm:$0xff] %v482
  %507 = vst [vmem:[%s5 + $0x70] sm:$0xff] %v487
  %508 = vst [vmem:[%s5 + $0x78] sm:$0xff] %v490
  // Predicated region
  $region18: #{sage_forward.4} parent=0 // pred_check
    _
  $region19: #{sage_forward.4} parent=0 // pred_check_branch
    %510 = sbr.rel (0) target = $region21
  $region20: #{sage_forward.4} parent=0 // pred_region
    _
  $region21: #{sage_forward.4} parent=0 // pred_fallthru
    _
  // Predicated region
  $region22: #{sage_forward.4} parent=0 // pred_check
    _
  $region23: #{sage_forward.4} parent=0 // pred_check_branch
    %512 = sbr.rel (0) target = $region25
  $region24: #{sage_forward.4} parent=0 // pred_region
    _
  $region25: #{sage_forward.4} parent=0 // pred_fallthru
    _
  // Predicated region
  $region26: #{sage_forward.4} parent=0 // pred_check
    _
  $region27: #{sage_forward.4} parent=0 // pred_check_branch
    %514 = sbr.rel (0) target = $region29
  $region28: #{sage_forward.4} parent=0 // pred_region
    _
  $region29: #{sage_forward.4} parent=0 // pred_fallthru
    _
  // Predicated region
  $region30: #{sage_forward.4} parent=0 // pred_check
    _
  $region31: #{sage_forward.4} parent=0 // pred_check_branch
    %516 = sbr.rel (0) target = $region33
  $region32: #{sage_forward.4} parent=0 // pred_region
    _
  $region33: #{sage_forward.4} parent=0 // pred_fallthru
    _

// kernel: sage_forward.7
$region0: #{sage_forward.7}
  #allocation0 [shape = 'u32[]', space=smem, size = 0x4, offset = 0x4, fixed_abs, tag = 'smem constant byte address 0x4 - core index']
  #allocation1 [shape = 'u32[144,128]{1,0:T(1,128)}', space=vmem, size = 0x12000, scoped, tag = 'internal scratch']
  #allocation2 [shape = 'f32[128,128]{1,0:T(8,128)}', space=vmem, size = 0x10000, scoped, tag = 'scratch operand']
  %s0 = inlined_call_operand.vmem [shape: bf16[128,128], index: 0, kind: input, shape index: {}]
  %s1 = inlined_call_operand.vmem [shape: bf16[128,128], index: 1, kind: input, shape index: {}]
  %s2 = inlined_call_operand.vmem [shape: f32[128,128], index: 2, kind: input, shape index: {}]
  %s3 = inlined_call_operand.vmem [shape: bf16[128,128], index: 3, kind: output, shape index: {}]
  %s4 = sld [smem:[#allocation0]]
  $region30: #{sage_forward.7} parent=0
    _
  %s6 = ssub.s32 1, %s4
  %s7 = scalar_select 0, %s6, %s4
  // Predicated region
  $region2: #{sage_forward.7} parent=0 // pred_check
    _
  $region3: #{sage_forward.7} parent=0 // pred_check_branch
    %9 = sbr.rel (0) target = $region5
  $region4: #{sage_forward.7} parent=0 // pred_region
    _
  $region5: #{sage_forward.7} parent=0 // pred_fallthru
    _
  // Predicated region
  $region6: #{sage_forward.7} parent=0 // pred_check
    _
  $region7: #{sage_forward.7} parent=0 // pred_check_branch
    %11 = sbr.rel (0) target = $region9
  $region8: #{sage_forward.7} parent=0 // pred_region
    _
  $region9: #{sage_forward.7} parent=0 // pred_fallthru
    _
  // Predicated region
  $region10: #{sage_forward.7} parent=0 // pred_check
    _
  $region11: #{sage_forward.7} parent=0 // pred_check_branch
    %13 = sbr.rel (0) target = $region13
  $region12: #{sage_forward.7} parent=0 // pred_region
    _
  $region13: #{sage_forward.7} parent=0 // pred_fallthru
    _
  %p15 = scmp.eq.s32.totalorder 0, 0
  // Predicated region
  $region14: #{sage_forward.7} parent=0 // pred_check
    %p16 = pneg %p15
  $region15: #{sage_forward.7} parent=0 // pred_check_branch
    %18 = sbr.rel (%p16) target = $region17
  $region16: #{sage_forward.7} parent=0 // pred_region
    %19 = vst [vmem:[#allocation2] sm:$0xff] 0.0
    %20 = vst [vmem:[#allocation2 + $0x8] sm:$0xff] 0.0
    %21 = vst [vmem:[#allocation2 + $0x10] sm:$0xff] 0.0
    %22 = vst [vmem:[#allocation2 + $0x18] sm:$0xff] 0.0
    %23 = vst [vmem:[#allocation2 + $0x20] sm:$0xff] 0.0
    %24 = vst [vmem:[#allocation2 + $0x28] sm:$0xff] 0.0
    %25 = vst [vmem:[#allocation2 + $0x30] sm:$0xff] 0.0
    %26 = vst [vmem:[#allocation2 + $0x38] sm:$0xff] 0.0
    %27 = vst [vmem:[#allocation2 + $0x40] sm:$0xff] 0.0
    %28 = vst [vmem:[#allocation2 + $0x48] sm:$0xff] 0.0
    %29 = vst [vmem:[#allocation2 + $0x50] sm:$0xff] 0.0
    %30 = vst [vmem:[#allocation2 + $0x58] sm:$0xff] 0.0
    %31 = vst [vmem:[#allocation2 + $0x60] sm:$0xff] 0.0
    %32 = vst [vmem:[#allocation2 + $0x68] sm:$0xff] 0.0
    %33 = vst [vmem:[#allocation2 + $0x70] sm:$0xff] 0.0
    %34 = vst [vmem:[#allocation2 + $0x78] sm:$0xff] 0.0
  $region17: #{sage_forward.7} parent=0 // pred_fallthru
    _
  %v35 = vld [vmem:[#allocation2] sm:$0xff]
  %v36 = vld [vmem:[#allocation2 + $0x8] sm:$0xff]
  %v37 = vld [vmem:[#allocation2 + $0x10] sm:$0xff]
  %v38 = vld [vmem:[#allocation2 + $0x18] sm:$0xff]
  %v39 = vld [vmem:[#allocation2 + $0x20] sm:$0xff]
  %v40 = vld [vmem:[#allocation2 + $0x28] sm:$0xff]
  %v41 = vld [vmem:[#allocation2 + $0x30] sm:$0xff]
  %v42 = vld [vmem:[#allocation2 + $0x38] sm:$0xff]
  %v43 = vld [vmem:[#allocation2 + $0x40] sm:$0xff]
  %v44 = vld [vmem:[#allocation2 + $0x48] sm:$0xff]
  %v45 = vld [vmem:[#allocation2 + $0x50] sm:$0xff]
  %v46 = vld [vmem:[#allocation2 + $0x58] sm:$0xff]
  %v47 = vld [vmem:[#allocation2 + $0x60] sm:$0xff]
  %v48 = vld [vmem:[#allocation2 + $0x68] sm:$0xff]
  %v49 = vld [vmem:[#allocation2 + $0x70] sm:$0xff]
  %v50 = vld [vmem:[#allocation2 + $0x78] sm:$0xff]
  %v51 = vld [vmem:[%s0] sm:$0xf]
  %v52 = vld [vmem:[%s0 + $0x4] sm:$0xf]
  %v53 = vld [vmem:[%s0 + $0x8] sm:$0xf]
  %v54 = vld [vmem:[%s0 + $0xc] sm:$0xf]
  %v55 = vld [vmem:[%s0 + $0x10] sm:$0xf]
  %v56 = vld [vmem:[%s0 + $0x14] sm:$0xf]
  %v57 = vld [vmem:[%s0 + $0x18] sm:$0xf]
  %v58 = vld [vmem:[%s0 + $0x1c] sm:$0xf]
  %v59 = vld [vmem:[%s0 + $0x20] sm:$0xf]
  %v60 = vld [vmem:[%s0 + $0x24] sm:$0xf]
  %v61 = vld [vmem:[%s0 + $0x28] sm:$0xf]
  %v62 = vld [vmem:[%s0 + $0x2c] sm:$0xf]
  %v63 = vld [vmem:[%s0 + $0x30] sm:$0xf]
  %v64 = vld [vmem:[%s0 + $0x34] sm:$0xf]
  %v65 = vld [vmem:[%s0 + $0x38] sm:$0xf]
  %v66 = vld [vmem:[%s0 + $0x3c] sm:$0xf]
  %v67 = vld [vmem:[%s1] sm:$0xf]
  %v68 = vld [vmem:[%s1 + $0x4] sm:$0xf]
  %v69 = vld [vmem:[%s1 + $0x8] sm:$0xf]
  %v70 = vld [vmem:[%s1 + $0xc] sm:$0xf]
  %v71 = vld [vmem:[%s1 + $0x10] sm:$0xf]
  %v72 = vld [vmem:[%s1 + $0x14] sm:$0xf]
  %v73 = vld [vmem:[%s1 + $0x18] sm:$0xf]
  %v74 = vld [vmem:[%s1 + $0x1c] sm:$0xf]
  %v75 = vld [vmem:[%s1 + $0x20] sm:$0xf]
  %v76 = vld [vmem:[%s1 + $0x24] sm:$0xf]
  %v77 = vld [vmem:[%s1 + $0x28] sm:$0xf]
  %v78 = vld [vmem:[%s1 + $0x2c] sm:$0xf]
  %v79 = vld [vmem:[%s1 + $0x30] sm:$0xf]
  %v80 = vld [vmem:[%s1 + $0x34] sm:$0xf]
  %v81 = vld [vmem:[%s1 + $0x38] sm:$0xf]
  %v82 = vld [vmem:[%s1 + $0x3c] sm:$0xf]
  %v99 = vunpack.c.l.b16 %v51
  %v100 = vunpack.c.l.b16 %v52
  %v101 = vunpack.c.l.b16 %v53
  %v102 = vunpack.c.l.b16 %v54
  %v103 = vunpack.c.l.b16 %v55
  %v104 = vunpack.c.l.b16 %v56
  %v105 = vunpack.c.l.b16 %v57
  %v106 = vunpack.c.l.b16 %v58
  %v107 = vunpack.c.l.b16 %v59
  %v108 = vunpack.c.l.b16 %v60
  %v109 = vunpack.c.l.b16 %v61
  %v110 = vunpack.c.l.b16 %v62
  %v111 = vunpack.c.l.b16 %v63
  %v112 = vunpack.c.l.b16 %v64
  %v113 = vunpack.c.l.b16 %v65
  %v114 = vunpack.c.l.b16 %v66
  %v115 = vpack.c.b16 %v100, %v99
  %v116 = vpack.c.b16 %v102, %v101
  %v117 = vpack.c.b16 %v104, %v103
  %v118 = vpack.c.b16 %v106, %v105
  %v119 = vpack.c.b16 %v108, %v107
  %v120 = vpack.c.b16 %v110, %v109
  %v121 = vpack.c.b16 %v112, %v111
  %v122 = vpack.c.b16 %v114, %v113
  %v147 = vunpack.c.l.b16 %v67
  %v148 = vunpack.c.l.b16 %v68
  %v149 = vunpack.c.l.b16 %v69
  %v150 = vunpack.c.l.b16 %v70
  %v151 = vunpack.c.l.b16 %v71
  %v152 = vunpack.c.l.b16 %v72
  %v153 = vunpack.c.l.b16 %v73
  %v154 = vunpack.c.l.b16 %v74
  %v155 = vunpack.c.l.b16 %v75
  %v156 = vunpack.c.l.b16 %v76
  %v157 = vunpack.c.l.b16 %v77
  %v158 = vunpack.c.l.b16 %v78
  %v159 = vunpack.c.l.b16 %v79
  %v160 = vunpack.c.l.b16 %v80
  %v161 = vunpack.c.l.b16 %v81
  %v162 = vunpack.c.l.b16 %v82
  %v163 = vpack.c.b16 %v148, %v147
  %v164 = vpack.c.b16 %v150, %v149
  %v165 = vpack.c.b16 %v152, %v151
  %v166 = vpack.c.b16 %v154, %v153
  %v167 = vpack.c.b16 %v156, %v155
  %v168 = vpack.c.b16 %v158, %v157
  %v169 = vpack.c.b16 %v160, %v159
  %v170 = vpack.c.b16 %v162, %v161
  %179 = vmatprep.subr.bf16.mxu0 0
  %180 = vmatpush1.bf16.msra.mxu0 %v170
  %181 = vmatprep.subr.bf16.mxu0 0
  %182 = vmatpush1.bf16.msra.mxu0 %v169
  %183 = vmatprep.subr.bf16.mxu0 0
  %184 = vmatpush1.bf16.msra.mxu0 %v168
  %185 = vmatprep.subr.bf16.mxu0 0
  %186 = vmatpush1.bf16.msra.mxu0 %v167
  %187 = vmatprep.subr.bf16.mxu0 0
  %188 = vmatpush1.bf16.msra.mxu0 %v166
  %189 = vmatprep.subr.bf16.mxu0 0
  %190 = vmatpush1.bf16.msra.mxu0 %v165
  %191 = vmatprep.subr.bf16.mxu0 0
  %192 = vmatpush1.bf16.msra.mxu0 %v164
  %193 = vmatprep.subr.bf16.mxu0 0
  %194 = vmatpush1.bf16.msra.mxu0 %v163
  %195 = vmatprep.subr.bf16.mxu0 0
  %196 = vmatpush2.bf16.msra.mxu0 0
  %197 = vmatprep.subr.bf16.mxu0 0
  %198 = vmatpush2.bf16.msra.mxu0 0
  %199 = vmatprep.subr.bf16.mxu0 0
  %200 = vmatpush2.bf16.msra.mxu0 0
  %201 = vmatprep.subr.bf16.mxu0 0
  %202 = vmatpush2.bf16.msra.mxu0 0
  %203 = vmatprep.subr.bf16.mxu0 0
  %204 = vmatpush2.bf16.msra.mxu0 0
  %205 = vmatprep.subr.bf16.mxu0 0
  %206 = vmatpush2.bf16.msra.mxu0 0
  %207 = vmatprep.subr.bf16.mxu0 0
  %208 = vmatpush2.bf16.msra.mxu0 0
  %209 = vmatprep.subr.bf16.mxu0 0
  %210 = vmatpush2.bf16.msra.mxu0 0
  %211 = vmatprep.mubr.bf16.mxu0 0
  %212 = vmatmul.mubr.bf16.gmra.mxu0 %v115
  %v213 = vpop.f32.mrf.mxu0
  %v214 = vadd.f32 0.0, %v213
  %v215 = vpop.f32.mrf.mxu0
  %v216 = vpop.f32.mrf.mxu0
  %v217 = vadd.f32 0.0, %v216
  %v218 = vpop.f32.mrf.mxu0
  %219 = vmatprep.mubr.bf16.mxu0 0
  %220 = vmatmul.mubr.bf16.gmra.mxu0 %v116
  %v221 = vpop.f32.mrf.mxu0
  %v222 = vadd.f32 0.0, %v221
  %v223 = vpop.f32.mrf.mxu0
  %v224 = vpop.f32.mrf.mxu0
  %v225 = vadd.f32 0.0, %v224
  %v226 = vpop.f32.mrf.mxu0
  %227 = vmatprep.mubr.bf16.mxu0 0
  %228 = vmatmul.mubr.bf16.gmra.mxu0 %v117
  %v229 = vpop.f32.mrf.mxu0
  %v230 = vadd.f32 0.0, %v229
  %v231 = vpop.f32.mrf.mxu0
  %v232 = vpop.f32.mrf.mxu0
  %v233 = vadd.f32 0.0, %v232
  %v234 = vpop.f32.mrf.mxu0
  %235 = vmatprep.mubr.bf16.mxu0 0
  %236 = vmatmul.mubr.bf16.gmra.mxu0 %v118
  %v237 = vpop.f32.mrf.mxu0
  %v238 = vadd.f32 0.0, %v237
  %v239 = vpop.f32.mrf.mxu0
  %v240 = vpop.f32.mrf.mxu0
  %v241 = vadd.f32 0.0, %v240
  %v242 = vpop.f32.mrf.mxu0
  %243 = vmatprep.mubr.bf16.mxu0 0
  %244 = vmatmul.mubr.bf16.gmra.mxu0 %v119
  %v245 = vpop.f32.mrf.mxu0
  %v246 = vadd.f32 0.0, %v245
  %v247 = vpop.f32.mrf.mxu0
  %v248 = vpop.f32.mrf.mxu0
  %v249 = vadd.f32 0.0, %v248
  %v250 = vpop.f32.mrf.mxu0
  %251 = vmatprep.mubr.bf16.mxu0 0
  %252 = vmatmul.mubr.bf16.gmra.mxu0 %v120
  %v253 = vpop.f32.mrf.mxu0
  %v254 = vadd.f32 0.0, %v253
  %v255 = vpop.f32.mrf.mxu0
  %v256 = vpop.f32.mrf.mxu0
  %v257 = vadd.f32 0.0, %v256
  %v258 = vpop.f32.mrf.mxu0
  %259 = vmatprep.mubr.bf16.mxu0 0
  %260 = vmatmul.mubr.bf16.gmra.mxu0 %v121
  %v261 = vpop.f32.mrf.mxu0
  %v262 = vadd.f32 0.0, %v261
  %v263 = vpop.f32.mrf.mxu0
  %v264 = vpop.f32.mrf.mxu0
  %v265 = vadd.f32 0.0, %v264
  %v266 = vpop.f32.mrf.mxu0
  %267 = vmatprep.mubr.bf16.mxu0 0
  %268 = vmatmul.mubr.bf16.gmra.mxu0 %v122
  %v269 = vpop.f32.mrf.mxu0
  %v270 = vadd.f32 0.0, %v269
  %v271 = vpop.f32.mrf.mxu0
  %v272 = vpop.f32.mrf.mxu0
  %v273 = vadd.f32 0.0, %v272
  %v274 = vpop.f32.mrf.mxu0
  %275 = vdwg.mxu0
  %v276 = vadd.f32 %v35, %v214
  %v277 = vadd.f32 %v36, %v217
  %v278 = vadd.f32 %v37, %v222
  %v279 = vadd.f32 %v38, %v225
  %v280 = vadd.f32 %v39, %v230
  %v281 = vadd.f32 %v40, %v233
  %v282 = vadd.f32 %v41, %v238
  %v283 = vadd.f32 %v42, %v241
  %v284 = vadd.f32 %v43, %v246
  %v285 = vadd.f32 %v44, %v249
  %v286 = vadd.f32 %v45, %v254
  %v287 = vadd.f32 %v46, %v257
  %v288 = vadd.f32 %v47, %v262
  %v289 = vadd.f32 %v48, %v265
  %v290 = vadd.f32 %v49, %v270
  %v291 = vadd.f32 %v50, %v273
  %292 = vst [vmem:[#allocation2] sm:$0xff] %v276
  %293 = vst [vmem:[#allocation2 + $0x8] sm:$0xff] %v277
  %294 = vst [vmem:[#allocation2 + $0x10] sm:$0xff] %v278
  %295 = vst [vmem:[#allocation2 + $0x18] sm:$0xff] %v279
  %296 = vst [vmem:[#allocation2 + $0x20] sm:$0xff] %v280
  %297 = vst [vmem:[#allocation2 + $0x28] sm:$0xff] %v281
  %298 = vst [vmem:[#allocation2 + $0x30] sm:$0xff] %v282
  %299 = vst [vmem:[#allocation2 + $0x38] sm:$0xff] %v283
  %300 = vst [vmem:[#allocation2 + $0x40] sm:$0xff] %v284
  %301 = vst [vmem:[#allocation2 + $0x48] sm:$0xff] %v285
  %302 = vst [vmem:[#allocation2 + $0x50] sm:$0xff] %v286
  %303 = vst [vmem:[#allocation2 + $0x58] sm:$0xff] %v287
  %304 = vst [vmem:[#allocation2 + $0x60] sm:$0xff] %v288
  %305 = vst [vmem:[#allocation2 + $0x68] sm:$0xff] %v289
  %306 = vst [vmem:[#allocation2 + $0x70] sm:$0xff] %v290
  %307 = vst [vmem:[#allocation2 + $0x78] sm:$0xff] %v291
  // Predicated region
  $region18: #{sage_forward.7} parent=0 // pred_check
    %p308 = pneg %p15
  $region19: #{sage_forward.7} parent=0 // pred_check_branch
    %310 = sbr.rel (%p308) target = $region21
  $region20: #{sage_forward.7} parent=0 // pred_region
    %v311 = vld [vmem:[#allocation2] sm:$0xff]
    %v312 = vld [vmem:[#allocation2 + $0x8] sm:$0xff]
    %v313 = vld [vmem:[#allocation2 + $0x10] sm:$0xff]
    %v314 = vld [vmem:[#allocation2 + $0x18] sm:$0xff]
    %v315 = vld [vmem:[#allocation2 + $0x20] sm:$0xff]
    %v316 = vld [vmem:[#allocation2 + $0x28] sm:$0xff]
    %v317 = vld [vmem:[#allocation2 + $0x30] sm:$0xff]
    %v318 = vld [vmem:[#allocation2 + $0x38] sm:$0xff]
    %v319 = vld [vmem:[#allocation2 + $0x40] sm:$0xff]
    %v320 = vld [vmem:[#allocation2 + $0x48] sm:$0xff]
    %v321 = vld [vmem:[#allocation2 + $0x50] sm:$0xff]
    %v322 = vld [vmem:[#allocation2 + $0x58] sm:$0xff]
    %v323 = vld [vmem:[#allocation2 + $0x60] sm:$0xff]
    %v324 = vld [vmem:[#allocation2 + $0x68] sm:$0xff]
    %v325 = vld [vmem:[#allocation2 + $0x70] sm:$0xff]
    %v326 = vld [vmem:[#allocation2 + $0x78] sm:$0xff]
    %v327 = vld [vmem:[%s2] sm:$0xff]
    %v328 = vld [vmem:[%s2 + $0x8] sm:$0xff]
    %v329 = vld [vmem:[%s2 + $0x10] sm:$0xff]
    %v330 = vld [vmem:[%s2 + $0x18] sm:$0xff]
    %v331 = vld [vmem:[%s2 + $0x20] sm:$0xff]
    %v332 = vld [vmem:[%s2 + $0x28] sm:$0xff]
    %v333 = vld [vmem:[%s2 + $0x30] sm:$0xff]
    %v334 = vld [vmem:[%s2 + $0x38] sm:$0xff]
    %v335 = vld [vmem:[%s2 + $0x40] sm:$0xff]
    %v336 = vld [vmem:[%s2 + $0x48] sm:$0xff]
    %v337 = vld [vmem:[%s2 + $0x50] sm:$0xff]
    %v338 = vld [vmem:[%s2 + $0x58] sm:$0xff]
    %v339 = vld [vmem:[%s2 + $0x60] sm:$0xff]
    %v340 = vld [vmem:[%s2 + $0x68] sm:$0xff]
    %v341 = vld [vmem:[%s2 + $0x70] sm:$0xff]
    %v342 = vld [vmem:[%s2 + $0x78] sm:$0xff]
    %v343 = vadd.f32 %v311, %v327
    %v344 = vadd.f32 %v312, %v328
    %v345 = vadd.f32 %v313, %v329
    %v346 = vadd.f32 %v314, %v330
    %v347 = vadd.f32 %v315, %v331
    %v348 = vadd.f32 %v316, %v332
    %v349 = vadd.f32 %v317, %v333
    %v350 = vadd.f32 %v318, %v334
    %v351 = vadd.f32 %v319, %v335
    %v352 = vadd.f32 %v320, %v336
    %v353 = vadd.f32 %v321, %v337
    %v354 = vadd.f32 %v322, %v338
    %v355 = vadd.f32 %v323, %v339
    %v356 = vadd.f32 %v324, %v340
    %v357 = vadd.f32 %v325, %v341
    %v358 = vadd.f32 %v326, %v342
    %v359 = vpack.c.bf16 %v344, %v343
    %v360 = vpack.c.bf16 %v346, %v345
    %v361 = vpack.c.bf16 %v348, %v347
    %v362 = vpack.c.bf16 %v350, %v349
    %v363 = vpack.c.bf16 %v352, %v351
    %v364 = vpack.c.bf16 %v354, %v353
    %v365 = vpack.c.bf16 %v356, %v355
    %v366 = vpack.c.bf16 %v358, %v357
    %v375 = vunpack.c.l.b16 %v359
    %v376 = vunpack.c.h.b16 %v359
    %v377 = vunpack.c.l.b16 %v360
    %v378 = vunpack.c.h.b16 %v360
    %v379 = vunpack.c.l.b16 %v361
    %v380 = vunpack.c.h.b16 %v361
    %v381 = vunpack.c.l.b16 %v362
    %v382 = vunpack.c.h.b16 %v362
    %v383 = vunpack.c.l.b16 %v363
    %v384 = vunpack.c.h.b16 %v363
    %v385 = vunpack.c.l.b16 %v364
    %v386 = vunpack.c.h.b16 %v364
    %v387 = vunpack.c.l.b16 %v365
    %v388 = vunpack.c.h.b16 %v365
    %v389 = vunpack.c.l.b16 %v366
    %v390 = vunpack.c.h.b16 %v366
    %v391 = vpack.c.b16 %v375, %v375
    %v392 = vpack.c.b16 %v376, %v376
    %v393 = vpack.c.b16 %v377, %v377
    %v394 = vpack.c.b16 %v378, %v378
    %v395 = vpack.c.b16 %v379, %v379
    %v396 = vpack.c.b16 %v380, %v380
    %v397 = vpack.c.b16 %v381, %v381
    %v398 = vpack.c.b16 %v382, %v382
    %v399 = vpack.c.b16 %v383, %v383
    %v400 = vpack.c.b16 %v384, %v384
    %v401 = vpack.c.b16 %v385, %v385
    %v402 = vpack.c.b16 %v386, %v386
    %v403 = vpack.c.b16 %v387, %v387
    %v404 = vpack.c.b16 %v388, %v388
    %v405 = vpack.c.b16 %v389, %v389
    %v406 = vpack.c.b16 %v390, %v390
    %423 = vst [vmem:[%s3] sm:$0xf] %v391
    %424 = vst [vmem:[%s3 + $0x4] sm:$0xf] %v392
    %425 = vst [vmem:[%s3 + $0x8] sm:$0xf] %v393
    %426 = vst [vmem:[%s3 + $0xc] sm:$0xf] %v394
    %427 = vst [vmem:[%s3 + $0x10] sm:$0xf] %v395
    %428 = vst [vmem:[%s3 + $0x14] sm:$0xf] %v396
    %429 = vst [vmem:[%s3 + $0x18] sm:$0xf] %v397
    %430 = vst [vmem:[%s3 + $0x1c] sm:$0xf] %v398
    %431 = vst [vmem:[%s3 + $0x20] sm:$0xf] %v399
    %432 = vst [vmem:[%s3 + $0x24] sm:$0xf] %v400
    %433 = vst [vmem:[%s3 + $0x28] sm:$0xf] %v401
    %434 = vst [vmem:[%s3 + $0x2c] sm:$0xf] %v402
    %435 = vst [vmem:[%s3 + $0x30] sm:$0xf] %v403
    %436 = vst [vmem:[%s3 + $0x34] sm:$0xf] %v404
    %437 = vst [vmem:[%s3 + $0x38] sm:$0xf] %v405
    %438 = vst [vmem:[%s3 + $0x3c] sm:$0xf] %v406
  $region21: #{sage_forward.7} parent=0 // pred_fallthru
    _
  // Predicated region
  $region22: #{sage_forward.7} parent=0 // pred_check
    _
  $region23: #{sage_forward.7} parent=0 // pred_check_branch
    %440 = sbr.rel (0) target = $region25
  $region24: #{sage_forward.7} parent=0 // pred_region
    _
  $region25: #{sage_forward.7} parent=0 // pred_fallthru
    _
  // Predicated region
  $region26: #{sage_forward.7} parent=0 // pred_check
    _
  $region27: #{sage_forward.7} parent=0 // pred_check_branch
    %442 = sbr.rel (0) target = $region29
  $region28: #{sage_forward.7} parent=0 // pred_region
    _
  $region29: #{sage_forward.7} parent=0 // pred_fallthru
    _

</llo_original>
